<compile_context>
chip_gen: v5e
topology: v5e:2x2
jax: 0.10.0
libtpu: 0.0.40
codegen_flags: <defaults>
</compile_context>

<pallas_src>
import functools

import numpy as np

import jax
import jax.numpy as jnp
from jax import lax
from jax.experimental import pallas as pl
from jax.experimental.pallas import tpu as pltpu


def _round_up(x, m):
    return ((x + m - 1) // m) * m


# -----------------------------------------------------------------------------
# Per-generation configuration
# -----------------------------------------------------------------------------
@functools.lru_cache(maxsize=None)
def _hw_config():
    """(block_m, block_n, vmem_limit_bytes, num_tensorcores) per TPU generation.

    v5e: 128-wide M tiles (4x128x128 MXU), modest VMEM budget.
    v6e: 512/1024 tiles (128 MiB VMEM), raise the scoped VMEM limit.
    v7x: capped tiles + 48 MiB limit (64 MiB physical VMEM), 2 TensorCores.
    """
    block_m, block_n, vmem_limit, num_cores = 256, 512, None, 1
    kind = ""
    try:
        kind = jax.devices()[0].device_kind.lower()
    except Exception:
        pass
    vmem_bytes = 0
    try:
        info = pltpu.get_tpu_info()
        vmem_bytes = int(getattr(info, "vmem_capacity_bytes", 0) or 0)
        for attr in ("num_cores", "core_count", "num_tensorcores", "tensorcore_count"):
            v = getattr(info, attr, None)
            if v:
                num_cores = max(num_cores, int(v))
                break
        kind = kind + " " + str(getattr(info, "chip_version", "")).lower()
    except Exception:
        pass
    if "v5" in kind:
        block_m, block_n, vmem_limit = 128, 512, 48 << 20
    elif "v6" in kind:
        block_m, block_n, vmem_limit = 512, 1024, 96 << 20
    elif "v7" in kind:
        block_m, block_n, vmem_limit = 256, 512, 48 << 20
        num_cores = max(num_cores, 2)
    if vmem_bytes:
        cap = vmem_bytes * 3 // 4
        vmem_limit = cap if vmem_limit is None else min(vmem_limit, cap)
    return block_m, block_n, vmem_limit, num_cores


def _mosaic_params(dimension_semantics, vmem_limit):
    if vmem_limit is None:
        return pltpu.CompilerParams(dimension_semantics=dimension_semantics)
    return pltpu.CompilerParams(dimension_semantics=dimension_semantics,
                                vmem_limit_bytes=int(vmem_limit))


def _choose_tm(M, block_m, num_cores):
    """M-tile: <= block_m, a multiple of 32 (layout-legal for f32/bf16 ragged blocks),
    and small enough that the grid has >= num_cores blocks when >1 TensorCore."""
    if num_cores > 1 and M >= 64:
        block_m = min(block_m, _round_up(pl.cdiv(M, num_cores), 32))
    if M <= block_m:
        return M                      # single block == full array dim (always legal)
    return block_m


# -----------------------------------------------------------------------------
# Pallas kernels
# -----------------------------------------------------------------------------
def _norm_resize_kernel(istd_ref, shift_ref, x_ref,
                        whc_ref, wwc_ref, whd_ref, wwd_ref,
                        oc_ref, od_ref, *, num_channels):
    # One (b, c) image plane.  Bilinear resize via separable bf16 matmuls on the *raw*
    # pixels (f32 accumulation); because the interpolation matrices are row-stochastic,
    #   Wh @ ((x - mean) * istd) @ Ww == (Wh @ x @ Ww) * istd - mean * istd
    # so the normalization collapses to an affine applied on the small resized tiles.
    c = lax.rem(pl.program_id(0), jnp.int32(num_channels))
    s = istd_ref[c]                 # 1/std            (SMEM scalar)
    t = shift_ref[c]                # -mean/std        (SMEM scalar)
    x = x_ref[0].astype(jnp.bfloat16)                                         # (Hi, Wi)
    tc = jnp.dot(whc_ref[...], x, preferred_element_type=jnp.float32)         # (Hoc, Wi)
    oc = jnp.dot(tc.astype(jnp.bfloat16), wwc_ref[...],
                 preferred_element_type=jnp.float32)                          # (Hoc, Woc)
    oc_ref[0] = (oc * s + t).astype(oc_ref.dtype)
    td = jnp.dot(whd_ref[...], x, preferred_element_type=jnp.float32)         # (Hod, Wi)
    od = jnp.dot(td.astype(jnp.bfloat16), wwd_ref[...],
                 preferred_element_type=jnp.float32)                          # (Hod, Wod)
    od_ref[0] = (od * s + t).astype(od_ref.dtype)


def _matmul_bias_kernel(x_ref, w_ref, b_ref, o_ref, *, apply_sigmoid):
    # bf16 MXU operands, f32 accumulation; x/w arrive already in bf16.
    a = x_ref[...].astype(jnp.bfloat16)
    acc = jnp.dot(a, w_ref[...], preferred_element_type=jnp.float32)
    acc = acc + b_ref[...]
    if apply_sigmoid:
        acc = jax.nn.sigmoid(acc)
    o_ref[...] = acc.astype(o_ref.dtype)


def _down_head_kernel(x_ref, w1_ref, b1_ref, w2_ref, b2_ref, feat_ref, seg_ref):
    # Fused dino_down_sample (as patches @ W1 + b1) and placeholder sem_seg head
    # (feat @ W2 + b2 -> sigmoid), both emitted from one kernel.
    a = x_ref[...].astype(jnp.bfloat16)
    feat = jnp.dot(a, w1_ref[...], preferred_element_type=jnp.float32) + b1_ref[...]
    feat_ref[...] = feat.astype(feat_ref.dtype)
    logits = jnp.dot(feat.astype(jnp.bfloat16), w2_ref[...],
                     preferred_element_type=jnp.float32) + b2_ref[...]
    seg_ref[...] = jax.nn.sigmoid(logits).astype(seg_ref.dtype)


# -----------------------------------------------------------------------------
# Pallas wrappers
# -----------------------------------------------------------------------------
def _bilinear_matrix(dst, src):
    """Row-stochastic interpolation matrix reproducing F.interpolate(align_corners=False,
    antialias=False).  Built with numpy so it is a compile-time constant."""
    if dst == src:
        return np.eye(dst, dtype=np.float32)
    scale = src / dst
    pos = (np.arange(dst, dtype=np.float64) + 0.5) * scale - 0.5
    pos = np.clip(pos, 0.0, float(src - 1))
    lo = np.floor(pos).astype(np.int64)
    hi = np.minimum(lo + 1, src - 1)
    frac = (pos - lo).astype(np.float32)
    m = np.zeros((dst, src), np.float32)
    rows = np.arange(dst)
    np.add.at(m, (rows, lo), 1.0 - frac)
    np.add.at(m, (rows, hi), frac)
    return m


def normalize_and_resize(images, mean, std, clip_res, dino_res):
    """Fused: clip_images = (img - mean) / std; F.interpolate to clip_res and dino_res.
    images: (B, C, H, W).  Returns (clip_resized, dino_resized), both NCHW f32."""
    B, C, Hi, Wi = images.shape
    Hoc, Woc = clip_res
    Hod, Wod = dino_res
    _, _, vmem_limit, _ = _hw_config()

    istd = (1.0 / std).astype(jnp.float32)                  # (C,)
    shift = (-(mean / std)).astype(jnp.float32)             # (C,)  == -mean * istd

    bf = jnp.bfloat16
    whc = jnp.asarray(_bilinear_matrix(Hoc, Hi), dtype=bf)
    wwc = jnp.asarray(_bilinear_matrix(Woc, Wi).T, dtype=bf)
    whd = jnp.asarray(_bilinear_matrix(Hod, Hi), dtype=bf)
    wwd = jnp.asarray(_bilinear_matrix(Wod, Wi).T, dtype=bf)

    x = images.reshape(B * C, Hi, Wi)                        # free reshape
    cost = pl.CostEstimate(
        flops=2 * B * C * (Hoc * Hi * Wi + Hoc * Wi * Woc + Hod * Hi * Wi + Hod * Wi * Wod),
        transcendentals=0,
        bytes_accessed=4 * B * C * (Hi * Wi + Hoc * Woc + Hod * Wod),
    )
    kern = functools.partial(_norm_resize_kernel, num_channels=C)
    clip_r, dino_r = pl.pallas_call(
        kern,
        out_shape=(jax.ShapeDtypeStruct((B * C, Hoc, Woc), images.dtype),
                   jax.ShapeDtypeStruct((B * C, Hod, Wod), images.dtype)),
        grid_spec=pltpu.PrefetchScalarGridSpec(
            num_scalar_prefetch=0,
            grid=(B * C,),                                   # flattened -> both TCs busy
            in_specs=[
                pl.BlockSpec(memory_space=pltpu.MemorySpace.SMEM),   # istd  (C,)
                pl.BlockSpec(memory_space=pltpu.MemorySpace.SMEM),   # shift (C,)
                pl.BlockSpec((1, Hi, Wi), lambda p: (p, 0, 0)),
                pl.BlockSpec((Hoc, Hi), lambda p: (0, 0)),
                pl.BlockSpec((Wi, Woc), lambda p: (0, 0)),
                pl.BlockSpec((Hod, Hi), lambda p: (0, 0)),
                pl.BlockSpec((Wi, Wod), lambda p: (0, 0)),
            ],
            out_specs=(pl.BlockSpec((1, Hoc, Woc), lambda p: (p, 0, 0)),
                       pl.BlockSpec((1, Hod, Wod), lambda p: (p, 0, 0))),
        ),
        compiler_params=_mosaic_params(("parallel",), vmem_limit),
        cost_estimate=cost,
    )(istd, shift, x, whc, wwc, whd, wwd)
    return clip_r.reshape(B, C, Hoc, Woc), dino_r.reshape(B, C, Hod, Wod)


def matmul_bias(x, w, b, *, apply_sigmoid=False, out_dtype=jnp.bfloat16,
                block_m=None, block_n=None):
    """Fused (M,K)@(K,N)+bias (+ optional sigmoid) on the MXU.

    Lane-dense N (weights/bias zero-padded once to a multiple of 128, result sliced);
    M tiled with a *ragged* trailing block (no wrapper-side activation pad / M-slice) --
    safe because K is un-tiled and trailing-block stores are masked along M.
    bf16 operands, f32 accumulation, bf16 (default) output.
    """
    M, K = x.shape
    N = w.shape[1]
    cfg_m, cfg_n, vmem_limit, num_cores = _hw_config()
    block_m = block_m or cfg_m
    block_n = block_n or cfg_n

    # --- lane-dense N (pad the tiny weight/bias once; tile if very wide) ---
    N_pad = _round_up(N, 128)
    tn = N_pad if N_pad <= block_n else block_n
    if N_pad % tn != 0:
        N_pad = _round_up(N_pad, tn)
    wb = w.astype(jnp.bfloat16)
    if N_pad != N:
        wb = jnp.pad(wb, ((0, 0), (0, N_pad - N)))
        b = jnp.pad(b, (0, N_pad - N))
    bm = b.astype(jnp.float32).reshape(1, N_pad)

    # --- ragged M tiling: no jnp.pad of the activation, no out[:M] slice ---
    tm = _choose_tm(M, block_m, num_cores)
    grid = (pl.cdiv(M, tm), N_pad // tn)

    cost = pl.CostEstimate(
        flops=2 * M * K * N_pad,
        transcendentals=(M * N_pad) if apply_sigmoid else 0,
        bytes_accessed=x.dtype.itemsize * M * K + 2 * K * N_pad
                       + np.dtype(out_dtype).itemsize * M * N_pad,
    )
    kern = functools.partial(_matmul_bias_kernel, apply_sigmoid=apply_sigmoid)
    out = pl.pallas_call(
        kern,
        out_shape=jax.ShapeDtypeStruct((M, N_pad), out_dtype),
        grid_spec=pltpu.PrefetchScalarGridSpec(
            num_scalar_prefetch=0,
            grid=grid,
            in_specs=[
                pl.BlockSpec((tm, K), lambda i, j: (i, 0)),
                pl.BlockSpec((K, tn), lambda i, j: (0, j)),
                pl.BlockSpec((1, tn), lambda i, j: (0, j)),
            ],
            out_specs=pl.BlockSpec((tm, tn), lambda i, j: (i, j)),
        ),
        compiler_params=_mosaic_params(("parallel", "parallel"), vmem_limit),
        cost_estimate=cost,
    )(x, wb, bm)
    if N_pad != N:
        out = out[:, :N]
    return out


def down_head_fused(patches, w1, b1, w2, b2):
    """Fused dino_down_sample + placeholder head: feat = patches@w1+b1,
    seg = sigmoid(feat@w2+b2).  patches: (M, K1) bf16; returns (feat bf16, seg f32)."""
    M, K1 = patches.shape
    N1, N2 = w1.shape[1], w2.shape[1]
    cfg_m, _, vmem_limit, num_cores = _hw_config()
    N1p, N2p = _round_up(N1, 128), _round_up(N2, 128)

    w1p = jnp.pad(w1.astype(jnp.bfloat16), ((0, 0), (0, N1p - N1)))
    b1p = jnp.pad(b1.astype(jnp.float32), (0, N1p - N1)).reshape(1, N1p)
    w2p = jnp.pad(w2.astype(jnp.bfloat16), ((0, N1p - N1), (0, N2p - N2)))
    b2p = jnp.pad(b2.astype(jnp.float32), (0, N2p - N2)).reshape(1, N2p)

    tm = _choose_tm(M, cfg_m, num_cores)
    grid = (pl.cdiv(M, tm),)

    cost = pl.CostEstimate(
        flops=2 * M * (K1 * N1p + N1p * N2p),
        transcendentals=M * N2p,
        bytes_accessed=patches.dtype.itemsize * M * K1
                       + 2 * (K1 * N1p + N1p * N2p) + 2 * M * N1p + 4 * M * N2p,
    )
    feat, seg = pl.pallas_call(
        _down_head_kernel,
        out_shape=(jax.ShapeDtypeStruct((M, N1p), jnp.bfloat16),
                   jax.ShapeDtypeStruct((M, N2p), jnp.float32)),
        grid_spec=pltpu.PrefetchScalarGridSpec(
            num_scalar_prefetch=0,
            grid=grid,
            in_specs=[
                pl.BlockSpec((tm, K1), lambda i: (i, 0)),
                pl.BlockSpec((K1, N1p), lambda i: (0, 0)),
                pl.BlockSpec((1, N1p), lambda i: (0, 0)),
                pl.BlockSpec((N1p, N2p), lambda i: (0, 0)),
                pl.BlockSpec((1, N2p), lambda i: (0, 0)),
            ],
            out_specs=(pl.BlockSpec((tm, N1p), lambda i: (i, 0)),
                       pl.BlockSpec((tm, N2p), lambda i: (i, 0))),
        ),
        compiler_params=_mosaic_params(("parallel",), vmem_limit),
        cost_estimate=cost,
    )(patches, w1p, b1p, w2p, b2p)
    if N1p != N1:
        feat = feat[:, :N1]
    if N2p != N2:
        seg = seg[:, :N2]
    return feat, seg


def conv_transpose_tokens(x_flat, w, b, *, B, H, W, k):
    """ConvTranspose2d(kernel=k, stride=k, padding=0) on token-flattened input.
    x_flat: (B*H*W, Cin) bf16 in (b,h,w) order; w (PyTorch layout): (Cin, Cout, k, k).
    Non-overlapping: pure channel matmul into Cout*k*k followed by a bf16 pixel shuffle
    to NCHW (module convention)."""
    Cin, Cout = w.shape[0], w.shape[1]
    wm = w.reshape(Cin, Cout * k * k)                 # columns ordered (cout, i, j)
    bm = jnp.repeat(b, k * k)
    y = matmul_bias(x_flat, wm, bm)                   # (B*H*W, Cout*k*k) bf16
    y = (y.reshape(B, H, W, Cout, k, k)
         .transpose(0, 3, 1, 4, 2, 5)                 # single pixel-shuffle to NCHW
         .reshape(B, Cout, H * k, W * k))
    return y


# -----------------------------------------------------------------------------
# GSNet (inference, non-sliding-window branch)
# -----------------------------------------------------------------------------
def init_params(key, D, up1_out, up2_out, proj1_out, proj2_out, down_out, n_cls):
    ks = jax.random.split(key, 14)
    s = 0.02
    f32 = jnp.float32
    return {
        # self.upsample1 : ConvTranspose2d(proj_dim, 256, k=2, s=2)
        "up1_w": s * jax.random.normal(ks[0], (D, up1_out, 2, 2), f32),
        "up1_b": s * jax.random.normal(ks[1], (up1_out,), f32),
        # self.upsample2 : ConvTranspose2d(proj_dim, 128, k=4, s=4)
        "up2_w": s * jax.random.normal(ks[2], (D, up2_out, 4, 4), f32),
        "up2_b": s * jax.random.normal(ks[3], (up2_out,), f32),
        # self.dino_decod_proj1 : Conv2d(768, 256, k=1)
        "proj1_w": s * jax.random.normal(ks[4], (proj1_out, D, 1, 1), f32),
        "proj1_b": s * jax.random.normal(ks[5], (proj1_out,), f32),
        # self.dino_decod_proj2 : ConvTranspose2d(768, 128, k=2, s=2)
        "proj2_w": s * jax.random.normal(ks[6], (D, proj2_out, 2, 2), f32),
        "proj2_b": s * jax.random.normal(ks[7], (proj2_out,), f32),
        # self.dino_down_sample : Conv2d(768, 512, k=2, s=2)
        "down_w": s * jax.random.normal(ks[8], (down_out, D, 2, 2), f32),
        "down_b": s * jax.random.normal(ks[9], (down_out,), f32),
        # placeholder head (TODO(synk) below)
        "head_w": s * jax.random.normal(ks[10], (n_cls, down_out, 1, 1), f32),
        "head_b": s * jax.random.normal(ks[11], (n_cls,), f32),
        # registered buffers
        "clip_pixel_mean": jnp.array([122.7709, 116.7460, 104.0937], f32),
        "clip_pixel_std": jnp.array([68.5005, 66.6322, 70.3232], f32),
    }


def gsnet_forward(params, images, clip_tokens, clip_layer4, clip_layer8,
                  dino_l4, dino_l8, dino_l12, *, clip_res, dino_res, Hc, Hd):
    B = images.shape[0]
    D = dino_l12.shape[-1]
    bf = jnp.bfloat16

    # ---- image preprocessing: fused resize + folded normalization --------------------
    # TODO(synk): ImageList.from_tensors / size_divisibility padding omitted (fixed-size batch).
    clip_images_resized, dino_images_resized = normalize_and_resize(
        images, params["clip_pixel_mean"], params["clip_pixel_std"], clip_res, dino_res)

    # ---- DINO branch (token-native bf16; no NCHW round trips around kernels) ---------
    # TODO(synk): dino_model.get_intermediate_layers (RSIB ViT) is an external backbone;
    # its token outputs are provided as inputs (dino_l4 / dino_l8 / dino_l12).
    tok_last = dino_l12[:, 1:, :].astype(bf).reshape(B, Hd, Hd, D)          # NHWC bf16
    Ho, Wo = Hd // 2, Hd // 2
    # TODO(synk): this 2x2 space-to-depth is still an XLA transpose (done in bf16 to halve
    # its traffic); fully folding it into the down kernel as 4 strided dots is possible.
    patches = (tok_last.reshape(B, Ho, 2, Wo, 2, D)
               .transpose(0, 1, 3, 2, 4, 5)
               .reshape(B * Ho * Wo, 4 * D))                                # (kh, kw, cin)
    w_down = params["down_w"].transpose(2, 3, 1, 0).reshape(4 * D, -1)      # (4D, 512)
    n_cls = params["head_w"].shape[0]
    w_head = params["head_w"].reshape(n_cls, -1).T                          # (512, n_cls)
    # Fused dino_down_sample + placeholder segmentation head (sigmoid inference path).
    # TODO(synk): sem_seg_head (CAT-Seg style predictor) is not in the reference source;
    # a 1x1-conv classifier over dino_feat_down stands in, fused into the same kernel.
    feat_flat, seg_flat = down_head_fused(
        patches, w_down, params["down_b"], w_head, params["head_b"])
    c_down = w_down.shape[1]
    dino_feat_down = feat_flat.reshape(B, Ho, Wo, c_down).transpose(0, 3, 1, 2)
    sem_seg = seg_flat.reshape(B, Ho, Wo, n_cls).transpose(0, 3, 1, 2)

    # dino_decod_proj1 : 1x1 conv directly on L4 tokens
    x_l4 = dino_l4[:, 1:, :].astype(bf).reshape(B * Hd * Hd, D)
    w_p1 = params["proj1_w"].reshape(params["proj1_w"].shape[0], D).T       # (D, 256)
    y_l4 = matmul_bias(x_l4, w_p1, params["proj1_b"])
    dino_feat_L4_proj = y_l4.reshape(B, Hd, Hd, w_p1.shape[1]).transpose(0, 3, 1, 2)

    # dino_decod_proj2 : ConvTranspose2d(k=2, s=2) directly on L8 tokens
    dino_feat_L8_proj = conv_transpose_tokens(
        dino_l8[:, 1:, :].astype(bf).reshape(B * Hd * Hd, D),
        params["proj2_w"], params["proj2_b"], B=B, H=Hd, W=Hd, k=2)
    dino_feat_guidance = [dino_feat_L4_proj, dino_feat_L8_proj]

    # ---- CLIP branch ------------------------------------------------------------------
    # TODO(synk): clip_model.encode_image and the forward-hooked resblock activations are
    # an external backbone; token outputs are provided as inputs (clip_tokens / layers).
    res3 = clip_tokens[:, 1:, :].reshape(B, Hc, Hc, D).transpose(0, 3, 1, 2)     # B C H W
    x_r4 = clip_layer4[1:, :, :].astype(bf).transpose(1, 0, 2).reshape(B * Hc * Hc, D)
    x_r5 = clip_layer8[1:, :, :].astype(bf).transpose(1, 0, 2).reshape(B * Hc * Hc, D)
    res4 = conv_transpose_tokens(x_r4, params["up1_w"], params["up1_b"], B=B, H=Hc, W=Hc, k=2)
    res5 = conv_transpose_tokens(x_r5, params["up2_w"], params["up2_b"], B=B, H=Hc, W=Hc, k=4)
    clip_features_guidance = {"res5": res5, "res4": res4, "res3": res3}

    # TODO(synk): sem_seg_postprocess / ImageList cropping of the final sigmoid output omitted.
    return {
        "sem_seg": sem_seg,
        "clip_features_guidance": clip_features_guidance,
        "dino_feat_guidance": dino_feat_guidance,
        "dino_feat_down": dino_feat_down,
        "clip_images_resized": clip_images_resized,
        "dino_images_resized": dino_images_resized,
    }


# -----------------------------------------------------------------------------
if __name__ == "__main__":
    key = jax.random.PRNGKey(0)
    k_img, k_clip, k_l4, k_l8, k_d4, k_d8, k_d12, k_par = jax.random.split(key, 8)

    # Small, shape-consistent stand-ins for the real model sizes:
    #   proj_dim 768 -> 64, CLIP grid 24 -> 8, DINO grid 48 -> 8,
    #   up1 256 -> 32, up2 128 -> 16, proj1 256 -> 32, proj2 128 -> 16, down 512 -> 48
    B = 2
    H_img = W_img = 32
    clip_res = (16, 16)
    dino_res = (16, 16)
    Hc, Hd, D = 8, 8, 64
    up1_out, up2_out = 32, 16
    proj1_out, proj2_out = 32, 16
    down_out, n_cls = 48, 8

    params = init_params(k_par, D, up1_out, up2_out, proj1_out, proj2_out, down_out, n_cls)

    images = jax.random.uniform(k_img, (B, 3, H_img, W_img), jnp.float32) * 255.0
    clip_tokens = jax.random.normal(k_clip, (B, 1 + Hc * Hc, D), jnp.float32)     # encode_image output
    clip_layer4 = jax.random.normal(k_l4, (1 + Hc * Hc, B, D), jnp.float32)       # hooked resblock (LND)
    clip_layer8 = jax.random.normal(k_l8, (1 + Hc * Hc, B, D), jnp.float32)
    dino_l4 = jax.random.normal(k_d4, (B, 1 + Hd * Hd, D), jnp.float32)
    dino_l8 = jax.random.normal(k_d8, (B, 1 + Hd * Hd, D), jnp.float32)
    dino_l12 = jax.random.normal(k_d12, (B, 1 + Hd * Hd, D), jnp.float32)

    fwd = jax.jit(functools.partial(
        gsnet_forward, clip_res=clip_res, dino_res=dino_res, Hc=Hc, Hd=Hd))
    out = fwd(params, images, clip_tokens, clip_layer4, clip_layer8,
              dino_l4, dino_l8, dino_l12)
    jax.block_until_ready(out)

    # light sanity checks on shapes (mirrors the PyTorch module's conventions)
    assert out["sem_seg"].shape == (B, n_cls, Hd // 2, Hd // 2)
    assert out["clip_features_guidance"]["res4"].shape == (B, up1_out, 2 * Hc, 2 * Hc)
    assert out["clip_features_guidance"]["res5"].shape == (B, up2_out, 4 * Hc, 4 * Hc)
    assert out["dino_feat_guidance"][0].shape == (B, proj1_out, Hd, Hd)
    assert out["dino_feat_guidance"][1].shape == (B, proj2_out, 2 * Hd, 2 * Hd)
    assert out["dino_feat_down"].shape == (B, down_out, Hd // 2, Hd // 2)
    assert out["clip_images_resized"].shape == (B, 3) + clip_res
    assert out["dino_images_resized"].shape == (B, 3) + dino_res

    print("KERNEL_OK")
</pallas_src>

<mosaic_0001>
module attributes {stable_mosaic.version = 11 : i64} {
  func.func @_norm_resize_kernel(%arg0: i32, %arg1: memref<3xf32, #tpu.memory_space<smem>>, %arg2: memref<3xf32, #tpu.memory_space<smem>>, %arg3: memref<1x32x32xf32, #tpu.memory_space<vmem>>, %arg4: memref<16x32xbf16, #tpu.memory_space<vmem>>, %arg5: memref<32x16xbf16, #tpu.memory_space<vmem>>, %arg6: memref<16x32xbf16, #tpu.memory_space<vmem>>, %arg7: memref<32x16xbf16, #tpu.memory_space<vmem>>, %arg8: memref<1x16x16xf32, #tpu.memory_space<vmem>>, %arg9: memref<1x16x16xf32, #tpu.memory_space<vmem>>) attributes {dimension_semantics = [#tpu.dimension_semantics<parallel>], iteration_bounds = array<i64: 6>, scalar_prefetch = 0 : i64, scratch_operands = 0 : i64, tpu.core_type = #tpu.core_type<tc>, window_params = [{transform_indices = @transform_0, window_bounds = array<i64: 3>}, {transform_indices = @transform_1, window_bounds = array<i64: 3>}, {transform_indices = @transform_2, window_bounds = array<i64: 1, 32, 32>}, {pipeline_mode = #tpu.pipeline_mode<synchronous>, transform_indices = @transform_3, window_bounds = array<i64: 16, 32>}, {pipeline_mode = #tpu.pipeline_mode<synchronous>, transform_indices = @transform_4, window_bounds = array<i64: 32, 16>}, {pipeline_mode = #tpu.pipeline_mode<synchronous>, transform_indices = @transform_5, window_bounds = array<i64: 16, 32>}, {pipeline_mode = #tpu.pipeline_mode<synchronous>, transform_indices = @transform_6, window_bounds = array<i64: 32, 16>}, {transform_indices = @transform_7, window_bounds = array<i64: 1, 16, 16>}, {transform_indices = @transform_8, window_bounds = array<i64: 1, 16, 16>}]} {
    %c3_i32 = arith.constant 3 : i32
    %0 = arith.remsi %arg0, %c3_i32 : i32
    %1 = arith.index_cast %0 : i32 to index
    %2 = memref.load %arg1[%1] : memref<3xf32, #tpu.memory_space<smem>>
    %3 = arith.index_cast %0 : i32 to index
    %4 = memref.load %arg2[%3] : memref<3xf32, #tpu.memory_space<smem>>
    %c0 = arith.constant 0 : index
    %c0_0 = arith.constant 0 : index
    %c0_1 = arith.constant 0 : index
    %5 = vector.load %arg3[%c0, %c0_0, %c0_1] : memref<1x32x32xf32, #tpu.memory_space<vmem>>, vector<1x32x32xf32>
    %6 = vector.shape_cast %5 : vector<1x32x32xf32> to vector<32x32xf32>
    %7 = arith.truncf %6 : vector<32x32xf32> to vector<32x32xbf16>
    %c0_2 = arith.constant 0 : index
    %c0_3 = arith.constant 0 : index
    %8 = vector.load %arg4[%c0_2, %c0_3] : memref<16x32xbf16, #tpu.memory_space<vmem>>, vector<16x32xbf16>
    %cst = arith.constant dense<0.000000e+00> : vector<16x32xf32>
    %9 = tpu.matmul %8, %7, %cst {dimension_numbers = #tpu.dot_dimension_numbers<[1], [0], [0], [1], [0, 0, 1, 1], [], []>} : vector<16x32xbf16>, vector<32x32xbf16>, vector<16x32xf32> -> vector<16x32xf32>
    %10 = arith.truncf %9 : vector<16x32xf32> to vector<16x32xbf16>
    %c0_4 = arith.constant 0 : index
    %c0_5 = arith.constant 0 : index
    %11 = vector.load %arg5[%c0_4, %c0_5] : memref<32x16xbf16, #tpu.memory_space<vmem>>, vector<32x16xbf16>
    %cst_6 = arith.constant dense<0.000000e+00> : vector<16x16xf32>
    %12 = tpu.matmul %10, %11, %cst_6 {dimension_numbers = #tpu.dot_dimension_numbers<[1], [0], [0], [1], [0, 0, 1, 1], [], []>} : vector<16x32xbf16>, vector<32x16xbf16>, vector<16x16xf32> -> vector<16x16xf32>
    %13 = vector.broadcast %2 : f32 to vector<16x16xf32>
    %14 = arith.mulf %12, %13 : vector<16x16xf32>
    %15 = vector.broadcast %4 : f32 to vector<16x16xf32>
    %16 = arith.addf %14, %15 : vector<16x16xf32>
    %c0_7 = arith.constant 0 : index
    %c0_8 = arith.constant 0 : index
    %c0_9 = arith.constant 0 : index
    %17 = vector.load %arg8[%c0_7, %c0_8, %c0_9] : memref<1x16x16xf32, #tpu.memory_space<vmem>>, vector<1x16x16xf32>
    %18 = vector.shape_cast %17 : vector<1x16x16xf32> to vector<16x16xf32>
    %19 = vector.shape_cast %16 : vector<16x16xf32> to vector<1x16x16xf32>
    tpu.vector_store %arg8[%c0_7, %c0_8, %c0_9], %19 {strides = array<i32>} : memref<1x16x16xf32, #tpu.memory_space<vmem>>, vector<1x16x16xf32>,
    %c0_10 = arith.constant 0 : index
    %c0_11 = arith.constant 0 : index
    %20 = vector.load %arg6[%c0_10, %c0_11] : memref<16x32xbf16, #tpu.memory_space<vmem>>, vector<16x32xbf16>
    %cst_12 = arith.constant dense<0.000000e+00> : vector<16x32xf32>
    %21 = tpu.matmul %20, %7, %cst_12 {dimension_numbers = #tpu.dot_dimension_numbers<[1], [0], [0], [1], [0, 0, 1, 1], [], []>} : vector<16x32xbf16>, vector<32x32xbf16>, vector<16x32xf32> -> vector<16x32xf32>
    %22 = arith.truncf %21 : vector<16x32xf32> to vector<16x32xbf16>
    %c0_13 = arith.constant 0 : index
    %c0_14 = arith.constant 0 : index
    %23 = vector.load %arg7[%c0_13, %c0_14] : memref<32x16xbf16, #tpu.memory_space<vmem>>, vector<32x16xbf16>
    %cst_15 = arith.constant dense<0.000000e+00> : vector<16x16xf32>
    %24 = tpu.matmul %22, %23, %cst_15 {dimension_numbers = #tpu.dot_dimension_numbers<[1], [0], [0], [1], [0, 0, 1, 1], [], []>} : vector<16x32xbf16>, vector<32x16xbf16>, vector<16x16xf32> -> vector<16x16xf32>
    %25 = vector.broadcast %2 : f32 to vector<16x16xf32>
    %26 = arith.mulf %24, %25 : vector<16x16xf32>
    %27 = vector.broadcast %4 : f32 to vector<16x16xf32>
    %28 = arith.addf %26, %27 : vector<16x16xf32>
    %c0_16 = arith.constant 0 : index
    %c0_17 = arith.constant 0 : index
    %c0_18 = arith.constant 0 : index
    %29 = vector.load %arg9[%c0_16, %c0_17, %c0_18] : memref<1x16x16xf32, #tpu.memory_space<vmem>>, vector<1x16x16xf32>
    %30 = vector.shape_cast %29 : vector<1x16x16xf32> to vector<16x16xf32>
    %31 = vector.shape_cast %28 : vector<16x16xf32> to vector<1x16x16xf32>
    tpu.vector_store %arg9[%c0_16, %c0_17, %c0_18], %31 {strides = array<i32>} : memref<1x16x16xf32, #tpu.memory_space<vmem>>, vector<1x16x16xf32>,
    return
  }
  func.func @transform_0(%arg0: i32) -> i32 {
    %c0_i32 = arith.constant 0 : i32
    %c0_i32_0 = arith.constant 0 : i32
    return %c0_i32 : i32
  }
  func.func @transform_1(%arg0: i32) -> i32 {
    %c0_i32 = arith.constant 0 : i32
    %c0_i32_0 = arith.constant 0 : i32
    return %c0_i32 : i32
  }
  func.func @transform_2(%arg0: i32) -> (i32, i32, i32) {
    %c0_i32 = arith.constant 0 : i32
    %c0_i32_0 = arith.constant 0 : i32
    %c0_i32_1 = arith.constant 0 : i32
    return %arg0, %c0_i32, %c0_i32_0 : i32, i32, i32
  }
  func.func @transform_3(%arg0: i32) -> (i32, i32) {
    %c0_i32 = arith.constant 0 : i32
    %c0_i32_0 = arith.constant 0 : i32
    %c0_i32_1 = arith.constant 0 : i32
    return %c0_i32, %c0_i32_0 : i32, i32
  }
  func.func @transform_4(%arg0: i32) -> (i32, i32) {
    %c0_i32 = arith.constant 0 : i32
    %c0_i32_0 = arith.constant 0 : i32
    %c0_i32_1 = arith.constant 0 : i32
    return %c0_i32, %c0_i32_0 : i32, i32
  }
  func.func @transform_5(%arg0: i32) -> (i32, i32) {
    %c0_i32 = arith.constant 0 : i32
    %c0_i32_0 = arith.constant 0 : i32
    %c0_i32_1 = arith.constant 0 : i32
    return %c0_i32, %c0_i32_0 : i32, i32
  }
  func.func @transform_6(%arg0: i32) -> (i32, i32) {
    %c0_i32 = arith.constant 0 : i32
    %c0_i32_0 = arith.constant 0 : i32
    %c0_i32_1 = arith.constant 0 : i32
    return %c0_i32, %c0_i32_0 : i32, i32
  }
  func.func @transform_7(%arg0: i32) -> (i32, i32, i32) {
    %c0_i32 = arith.constant 0 : i32
    %c0_i32_0 = arith.constant 0 : i32
    %c0_i32_1 = arith.constant 0 : i32
    return %arg0, %c0_i32, %c0_i32_0 : i32, i32, i32
  }
  func.func @transform_8(%arg0: i32) -> (i32, i32, i32) {
    %c0_i32 = arith.constant 0 : i32
    %c0_i32_0 = arith.constant 0 : i32
    %c0_i32_1 = arith.constant 0 : i32
    return %arg0, %c0_i32, %c0_i32_0 : i32, i32, i32
  }
}

module attributes {stable_mosaic.version = 11 : i64} {
  func.func @_down_head_kernel(%arg0: i32, %arg1: memref<32x256xbf16, #tpu.memory_space<vmem>>, %arg2: memref<256x128xbf16, #tpu.memory_space<vmem>>, %arg3: memref<1x128xf32, #tpu.memory_space<vmem>>, %arg4: memref<128x128xbf16, #tpu.memory_space<vmem>>, %arg5: memref<1x128xf32, #tpu.memory_space<vmem>>, %arg6: memref<32x128xbf16, #tpu.memory_space<vmem>>, %arg7: memref<32x128xf32, #tpu.memory_space<vmem>>) attributes {dimension_semantics = [#tpu.dimension_semantics<parallel>], iteration_bounds = array<i64: 1>, scalar_prefetch = 0 : i64, scratch_operands = 0 : i64, tpu.core_type = #tpu.core_type<tc>, window_params = [{transform_indices = @transform_0, window_bounds = array<i64: 32, 256>}, {pipeline_mode = #tpu.pipeline_mode<synchronous>, transform_indices = @transform_1, window_bounds = array<i64: 256, 128>}, {pipeline_mode = #tpu.pipeline_mode<synchronous>, transform_indices = @transform_2, window_bounds = array<i64: 1, 128>}, {pipeline_mode = #tpu.pipeline_mode<synchronous>, transform_indices = @transform_3, window_bounds = array<i64: 128, 128>}, {pipeline_mode = #tpu.pipeline_mode<synchronous>, transform_indices = @transform_4, window_bounds = array<i64: 1, 128>}, {transform_indices = @transform_5, window_bounds = array<i64: 32, 128>}, {transform_indices = @transform_6, window_bounds = array<i64: 32, 128>}]} {
    %c0 = arith.constant 0 : index
    %c0_0 = arith.constant 0 : index
    %0 = vector.load %arg1[%c0, %c0_0] : memref<32x256xbf16, #tpu.memory_space<vmem>>, vector<32x256xbf16>
    %c0_1 = arith.constant 0 : index
    %c0_2 = arith.constant 0 : index
    %1 = vector.load %arg2[%c0_1, %c0_2] : memref<256x128xbf16, #tpu.memory_space<vmem>>, vector<256x128xbf16>
    %cst = arith.constant dense<0.000000e+00> : vector<32x128xf32>
    %2 = tpu.matmul %0, %1, %cst {dimension_numbers = #tpu.dot_dimension_numbers<[1], [0], [0], [1], [0, 0, 1, 1], [], []>} : vector<32x256xbf16>, vector<256x128xbf16>, vector<32x128xf32> -> vector<32x128xf32>
    %c0_3 = arith.constant 0 : index
    %c0_4 = arith.constant 0 : index
    %3 = vector.load %arg3[%c0_3, %c0_4] : memref<1x128xf32, #tpu.memory_space<vmem>>, vector<1x128xf32>
    %4 = vector.broadcast %3 : vector<1x128xf32> to vector<32x128xf32>
    %5 = arith.addf %2, %4 : vector<32x128xf32>
    %6 = arith.truncf %5 : vector<32x128xf32> to vector<32x128xbf16>
    %c0_5 = arith.constant 0 : index
    %c0_6 = arith.constant 0 : index
    %7 = vector.load %arg6[%c0_5, %c0_6] : memref<32x128xbf16, #tpu.memory_space<vmem>>, vector<32x128xbf16>
    tpu.vector_store %arg6[%c0_5, %c0_6], %6 {strides = array<i32>} : memref<32x128xbf16, #tpu.memory_space<vmem>>, vector<32x128xbf16>,
    %8 = arith.truncf %5 : vector<32x128xf32> to vector<32x128xbf16>
    %c0_7 = arith.constant 0 : index
    %c0_8 = arith.constant 0 : index
    %9 = vector.load %arg4[%c0_7, %c0_8] : memref<128x128xbf16, #tpu.memory_space<vmem>>, vector<128x128xbf16>
    %cst_9 = arith.constant dense<0.000000e+00> : vector<32x128xf32>
    %10 = tpu.matmul %8, %9, %cst_9 {dimension_numbers = #tpu.dot_dimension_numbers<[1], [0], [0], [1], [0, 0, 1, 1], [], []>} : vector<32x128xbf16>, vector<128x128xbf16>, vector<32x128xf32> -> vector<32x128xf32>
    %c0_10 = arith.constant 0 : index
    %c0_11 = arith.constant 0 : index
    %11 = vector.load %arg5[%c0_10, %c0_11] : memref<1x128xf32, #tpu.memory_space<vmem>>, vector<1x128xf32>
    %12 = vector.broadcast %11 : vector<1x128xf32> to vector<32x128xf32>
    %13 = arith.addf %10, %12 : vector<32x128xf32>
    %14 = arith.negf %13 : vector<32x128xf32>
    %15 = math.exp %14 : vector<32x128xf32>
    %cst_12 = arith.constant 1.000000e+00 : f32
    %16 = vector.broadcast %cst_12 : f32 to vector<32x128xf32>
    %17 = arith.addf %16, %15 : vector<32x128xf32>
    %18 = arith.divf %16, %17 : vector<32x128xf32>
    %c0_13 = arith.constant 0 : index
    %c0_14 = arith.constant 0 : index
    %19 = vector.load %arg7[%c0_13, %c0_14] : memref<32x128xf32, #tpu.memory_space<vmem>>, vector<32x128xf32>
    tpu.vector_store %arg7[%c0_13, %c0_14], %18 {strides = array<i32>} : memref<32x128xf32, #tpu.memory_space<vmem>>, vector<32x128xf32>,
    return
  }
  func.func @transform_0(%arg0: i32) -> (i32, i32) {
    %c0_i32 = arith.constant 0 : i32
    %c0_i32_0 = arith.constant 0 : i32
    return %arg0, %c0_i32 : i32, i32
  }
  func.func @transform_1(%arg0: i32) -> (i32, i32) {
    %c0_i32 = arith.constant 0 : i32
    %c0_i32_0 = arith.constant 0 : i32
    %c0_i32_1 = arith.constant 0 : i32
    return %c0_i32, %c0_i32_0 : i32, i32
  }
  func.func @transform_2(%arg0: i32) -> (i32, i32) {
    %c0_i32 = arith.constant 0 : i32
    %c0_i32_0 = arith.constant 0 : i32
    %c0_i32_1 = arith.constant 0 : i32
    return %c0_i32, %c0_i32_0 : i32, i32
  }
  func.func @transform_3(%arg0: i32) -> (i32, i32) {
    %c0_i32 = arith.constant 0 : i32
    %c0_i32_0 = arith.constant 0 : i32
    %c0_i32_1 = arith.constant 0 : i32
    return %c0_i32, %c0_i32_0 : i32, i32
  }
  func.func @transform_4(%arg0: i32) -> (i32, i32) {
    %c0_i32 = arith.constant 0 : i32
    %c0_i32_0 = arith.constant 0 : i32
    %c0_i32_1 = arith.constant 0 : i32
    return %c0_i32, %c0_i32_0 : i32, i32
  }
  func.func @transform_5(%arg0: i32) -> (i32, i32) {
    %c0_i32 = arith.constant 0 : i32
    %c0_i32_0 = arith.constant 0 : i32
    return %arg0, %c0_i32 : i32, i32
  }
  func.func @transform_6(%arg0: i32) -> (i32, i32) {
    %c0_i32 = arith.constant 0 : i32
    %c0_i32_0 = arith.constant 0 : i32
    return %arg0, %c0_i32 : i32, i32
  }
}

module attributes {stable_mosaic.version = 11 : i64} {
  func.func @_matmul_bias_kernel(%arg0: i32, %arg1: i32, %arg2: memref<128x64xbf16, #tpu.memory_space<vmem>>, %arg3: memref<64x256xbf16, #tpu.memory_space<vmem>>, %arg4: memref<1x256xf32, #tpu.memory_space<vmem>>, %arg5: memref<128x256xbf16, #tpu.memory_space<vmem>>) attributes {dimension_semantics = [#tpu.dimension_semantics<parallel>, #tpu.dimension_semantics<parallel>], iteration_bounds = array<i64: 1, 1>, scalar_prefetch = 0 : i64, scratch_operands = 0 : i64, tpu.core_type = #tpu.core_type<tc>, window_params = [{transform_indices = @transform_0, window_bounds = array<i64: 128, 64>}, {transform_indices = @transform_1, window_bounds = array<i64: 64, 256>}, {transform_indices = @transform_2, window_bounds = array<i64: 1, 256>}, {transform_indices = @transform_3, window_bounds = array<i64: 128, 256>}]} {
    %c0 = arith.constant 0 : index
    %c0_0 = arith.constant 0 : index
    %0 = vector.load %arg2[%c0, %c0_0] : memref<128x64xbf16, #tpu.memory_space<vmem>>, vector<128x64xbf16>
    %c0_1 = arith.constant 0 : index
    %c0_2 = arith.constant 0 : index
    %1 = vector.load %arg3[%c0_1, %c0_2] : memref<64x256xbf16, #tpu.memory_space<vmem>>, vector<64x256xbf16>
    %cst = arith.constant dense<0.000000e+00> : vector<128x256xf32>
    %2 = tpu.matmul %0, %1, %cst {dimension_numbers = #tpu.dot_dimension_numbers<[1], [0], [0], [1], [0, 0, 1, 1], [], []>} : vector<128x64xbf16>, vector<64x256xbf16>, vector<128x256xf32> -> vector<128x256xf32>
    %c0_3 = arith.constant 0 : index
    %c0_4 = arith.constant 0 : index
    %3 = vector.load %arg4[%c0_3, %c0_4] : memref<1x256xf32, #tpu.memory_space<vmem>>, vector<1x256xf32>
    %4 = vector.broadcast %3 : vector<1x256xf32> to vector<128x256xf32>
    %5 = arith.addf %2, %4 : vector<128x256xf32>
    %6 = arith.truncf %5 : vector<128x256xf32> to vector<128x256xbf16>
    %c0_5 = arith.constant 0 : index
    %c0_6 = arith.constant 0 : index
    %7 = vector.load %arg5[%c0_5, %c0_6] : memref<128x256xbf16, #tpu.memory_space<vmem>>, vector<128x256xbf16>
    tpu.vector_store %arg5[%c0_5, %c0_6], %6 {strides = array<i32>} : memref<128x256xbf16, #tpu.memory_space<vmem>>, vector<128x256xbf16>,
    return
  }
  func.func @transform_0(%arg0: i32, %arg1: i32) -> (i32, i32) {
    %c0_i32 = arith.constant 0 : i32
    %c0_i32_0 = arith.constant 0 : i32
    return %arg0, %c0_i32 : i32, i32
  }
  func.func @transform_1(%arg0: i32, %arg1: i32) -> (i32, i32) {
    %c0_i32 = arith.constant 0 : i32
    %c0_i32_0 = arith.constant 0 : i32
    return %c0_i32, %arg1 : i32, i32
  }
  func.func @transform_2(%arg0: i32, %arg1: i32) -> (i32, i32) {
    %c0_i32 = arith.constant 0 : i32
    %c0_i32_0 = arith.constant 0 : i32
    return %c0_i32, %arg1 : i32, i32
  }
  func.func @transform_3(%arg0: i32, %arg1: i32) -> (i32, i32) {
    %c0_i32 = arith.constant 0 : i32
    return %arg0, %arg1 : i32, i32
  }
}

module attributes {stable_mosaic.version = 11 : i64} {
  func.func @_matmul_bias_kernel(%arg0: i32, %arg1: i32, %arg2: memref<128x64xbf16, #tpu.memory_space<vmem>>, %arg3: memref<64x128xbf16, #tpu.memory_space<vmem>>, %arg4: memref<1x128xf32, #tpu.memory_space<vmem>>, %arg5: memref<128x128xbf16, #tpu.memory_space<vmem>>) attributes {dimension_semantics = [#tpu.dimension_semantics<parallel>, #tpu.dimension_semantics<parallel>], iteration_bounds = array<i64: 1, 1>, scalar_prefetch = 0 : i64, scratch_operands = 0 : i64, tpu.core_type = #tpu.core_type<tc>, window_params = [{transform_indices = @transform_0, window_bounds = array<i64: 128, 64>}, {transform_indices = @transform_1, window_bounds = array<i64: 64, 128>}, {transform_indices = @transform_2, window_bounds = array<i64: 1, 128>}, {transform_indices = @transform_3, window_bounds = array<i64: 128, 128>}]} {
    %c0 = arith.constant 0 : index
    %c0_0 = arith.constant 0 : index
    %0 = vector.load %arg2[%c0, %c0_0] : memref<128x64xbf16, #tpu.memory_space<vmem>>, vector<128x64xbf16>
    %c0_1 = arith.constant 0 : index
    %c0_2 = arith.constant 0 : index
    %1 = vector.load %arg3[%c0_1, %c0_2] : memref<64x128xbf16, #tpu.memory_space<vmem>>, vector<64x128xbf16>
    %cst = arith.constant dense<0.000000e+00> : vector<128x128xf32>
    %2 = tpu.matmul %0, %1, %cst {dimension_numbers = #tpu.dot_dimension_numbers<[1], [0], [0], [1], [0, 0, 1, 1], [], []>} : vector<128x64xbf16>, vector<64x128xbf16>, vector<128x128xf32> -> vector<128x128xf32>
    %c0_3 = arith.constant 0 : index
    %c0_4 = arith.constant 0 : index
    %3 = vector.load %arg4[%c0_3, %c0_4] : memref<1x128xf32, #tpu.memory_space<vmem>>, vector<1x128xf32>
    %4 = vector.broadcast %3 : vector<1x128xf32> to vector<128x128xf32>
    %5 = arith.addf %2, %4 : vector<128x128xf32>
    %6 = arith.truncf %5 : vector<128x128xf32> to vector<128x128xbf16>
    %c0_5 = arith.constant 0 : index
    %c0_6 = arith.constant 0 : index
    %7 = vector.load %arg5[%c0_5, %c0_6] : memref<128x128xbf16, #tpu.memory_space<vmem>>, vector<128x128xbf16>
    tpu.vector_store %arg5[%c0_5, %c0_6], %6 {strides = array<i32>} : memref<128x128xbf16, #tpu.memory_space<vmem>>, vector<128x128xbf16>,
    return
  }
  func.func @transform_0(%arg0: i32, %arg1: i32) -> (i32, i32) {
    %c0_i32 = arith.constant 0 : i32
    %c0_i32_0 = arith.constant 0 : i32
    return %arg0, %c0_i32 : i32, i32
  }
  func.func @transform_1(%arg0: i32, %arg1: i32) -> (i32, i32) {
    %c0_i32 = arith.constant 0 : i32
    %c0_i32_0 = arith.constant 0 : i32
    return %c0_i32, %arg1 : i32, i32
  }
  func.func @transform_2(%arg0: i32, %arg1: i32) -> (i32, i32) {
    %c0_i32 = arith.constant 0 : i32
    %c0_i32_0 = arith.constant 0 : i32
    return %c0_i32, %arg1 : i32, i32
  }
  func.func @transform_3(%arg0: i32, %arg1: i32) -> (i32, i32) {
    %c0_i32 = arith.constant 0 : i32
    return %arg0, %arg1 : i32, i32
  }
}

module attributes {stable_mosaic.version = 11 : i64} {
  func.func @_matmul_bias_kernel(%arg0: i32, %arg1: i32, %arg2: memref<128x64xbf16, #tpu.memory_space<vmem>>, %arg3: memref<64x128xbf16, #tpu.memory_space<vmem>>, %arg4: memref<1x128xf32, #tpu.memory_space<vmem>>, %arg5: memref<128x128xbf16, #tpu.memory_space<vmem>>) attributes {dimension_semantics = [#tpu.dimension_semantics<parallel>, #tpu.dimension_semantics<parallel>], iteration_bounds = array<i64: 1, 1>, scalar_prefetch = 0 : i64, scratch_operands = 0 : i64, tpu.core_type = #tpu.core_type<tc>, window_params = [{transform_indices = @transform_0, window_bounds = array<i64: 128, 64>}, {transform_indices = @transform_1, window_bounds = array<i64: 64, 128>}, {transform_indices = @transform_2, window_bounds = array<i64: 1, 128>}, {transform_indices = @transform_3, window_bounds = array<i64: 128, 128>}]} {
    %c0 = arith.constant 0 : index
    %c0_0 = arith.constant 0 : index
    %0 = vector.load %arg2[%c0, %c0_0] : memref<128x64xbf16, #tpu.memory_space<vmem>>, vector<128x64xbf16>
    %c0_1 = arith.constant 0 : index
    %c0_2 = arith.constant 0 : index
    %1 = vector.load %arg3[%c0_1, %c0_2] : memref<64x128xbf16, #tpu.memory_space<vmem>>, vector<64x128xbf16>
    %cst = arith.constant dense<0.000000e+00> : vector<128x128xf32>
    %2 = tpu.matmul %0, %1, %cst {dimension_numbers = #tpu.dot_dimension_numbers<[1], [0], [0], [1], [0, 0, 1, 1], [], []>} : vector<128x64xbf16>, vector<64x128xbf16>, vector<128x128xf32> -> vector<128x128xf32>
    %c0_3 = arith.constant 0 : index
    %c0_4 = arith.constant 0 : index
    %3 = vector.load %arg4[%c0_3, %c0_4] : memref<1x128xf32, #tpu.memory_space<vmem>>, vector<1x128xf32>
    %4 = vector.broadcast %3 : vector<1x128xf32> to vector<128x128xf32>
    %5 = arith.addf %2, %4 : vector<128x128xf32>
    %6 = arith.truncf %5 : vector<128x128xf32> to vector<128x128xbf16>
    %c0_5 = arith.constant 0 : index
    %c0_6 = arith.constant 0 : index
    %7 = vector.load %arg5[%c0_5, %c0_6] : memref<128x128xbf16, #tpu.memory_space<vmem>>, vector<128x128xbf16>
    tpu.vector_store %arg5[%c0_5, %c0_6], %6 {strides = array<i32>} : memref<128x128xbf16, #tpu.memory_space<vmem>>, vector<128x128xbf16>,
    return
  }
  func.func @transform_0(%arg0: i32, %arg1: i32) -> (i32, i32) {
    %c0_i32 = arith.constant 0 : i32
    %c0_i32_0 = arith.constant 0 : i32
    return %arg0, %c0_i32 : i32, i32
  }
  func.func @transform_1(%arg0: i32, %arg1: i32) -> (i32, i32) {
    %c0_i32 = arith.constant 0 : i32
    %c0_i32_0 = arith.constant 0 : i32
    return %c0_i32, %arg1 : i32, i32
  }
  func.func @transform_2(%arg0: i32, %arg1: i32) -> (i32, i32) {
    %c0_i32 = arith.constant 0 : i32
    %c0_i32_0 = arith.constant 0 : i32
    return %c0_i32, %arg1 : i32, i32
  }
  func.func @transform_3(%arg0: i32, %arg1: i32) -> (i32, i32) {
    %c0_i32 = arith.constant 0 : i32
    return %arg0, %arg1 : i32, i32
  }
}

</mosaic_0001>

<llo_original>
// kernel: gsnet_forward.6
$region0: #{gsnet_forward.6}
  #allocation0 [shape = 'u32[]', space=smem, size = 0x4, offset = 0x4, fixed_abs, tag = 'smem constant byte address 0x4 - core index']
  #allocation1 [shape = 'u32[72,128]{1,0:T(1,128)}', space=vmem, size = 0x9000, scoped, tag = 'internal scratch']
  %s0 = inlined_call_operand.vmem [shape: f32[3], index: 0, kind: input, shape index: {}]
  %s1 = inlined_call_operand.vmem [shape: f32[3], index: 1, kind: input, shape index: {}]
  %s2 = inlined_call_operand.hbm [shape: f32[6,32,32], index: 2, kind: input, shape index: {}]
  %s3 = inlined_call_operand.vmem [shape: bf16[16,32], index: 3, kind: input, shape index: {}, may-alias: {3,5}]
  %s4 = inlined_call_operand.vmem [shape: bf16[32,16], index: 4, kind: input, shape index: {}, may-alias: {4,6}]
  %s5 = inlined_call_operand.vmem [shape: bf16[16,32], index: 5, kind: input, shape index: {}, may-alias: {3,5}]
  %s6 = inlined_call_operand.vmem [shape: bf16[32,16], index: 6, kind: input, shape index: {}, may-alias: {4,6}]
  %s7 = inlined_call_operand.hbm [shape: f32[6,16,16], index: 7, kind: output, shape index: {0}]
  %s8 = inlined_call_operand.hbm [shape: f32[6,16,16], index: 8, kind: output, shape index: {1}]
  %9 = xla_tuple %s7, %s8
  %s10 = sld [smem:[#allocation0]]
  $region81: #{gsnet_forward.6} parent=0
    _
  %s12 = ssub.s32 1, %s10
  %s13 = scalar_select 0, %s12, %s10
  $region1: #{gsnet_forward.6} parent=0
    #allocation2 [shape = 'u8[512]{0}', space=smem, size = 0x200, scoped, tag = 'input window, operand 0, single buffered']
    #allocation3 [shape = 's32[2]{0}', space=sflag, size = 0x8, scoped, tag = 'scoped memory for gsnet_forward.6']
    #allocation4 [shape = 's32[2]{0}', space=sflag, size = 0x8, scoped, tag = 'scoped memory for gsnet_forward.6']
    #allocation5 [shape = 's32[2]{0}', space=sflag, size = 0x8, scoped, tag = 'scoped memory for gsnet_forward.6']
    #allocation6 [shape = 'u8[512]{0}', space=smem, size = 0x200, scoped, tag = 'input window, operand 1, single buffered']
    #allocation7 [shape = 's32[1]{0}', space=sflag, size = 0x4, scoped, tag = 'scoped memory for gsnet_forward.6']
    #allocation8 [shape = 'u8[32768]{0}', space=vmem, size = 0x8000, scoped, tag = 'input window, operand 2']
    #allocation9 [shape = 'u8[16384]{0}', space=vmem, size = 0x4000, scoped, tag = 'output window, operand 0']
    #allocation10 [shape = 'u8[16384]{0}', space=vmem, size = 0x4000, scoped, tag = 'output window, operand 1']
    #allocation11 [shape = 's32[2]{0}', space=sflag, size = 0x8, scoped, tag = 'scoped memory for gsnet_forward.6']
    %14 = vsyncpa [#allocation5], 0
    %15 = vsyncpa [#allocation7], 0
    %16 = vsyncpa [#allocation3], 0
    %s17 = scalar_lea.sflag [#allocation3], 1
    %18 = vsyncpa %s17, 0
    %19 = vsyncpa [#allocation4], 0
    %s20 = scalar_lea.sflag [#allocation4], 1
    %21 = vsyncpa %s20, 0
    %22 = vsyncpa [#allocation11], 0
    %s23 = scalar_lea.sflag [#allocation11], 1
    %24 = vsyncpa %s23, 0
    loop: start=0, step=1, limit=8
    $region2: #{gsnet_forward.6} parent=1 // loop_pre_header
      _
    $region3: #{gsnet_forward.6} parent=1 // loop_header
      %s26 = sphi 0, %s30
      %p27 = scmp.ge.s32.totalorder %s26, 8
      %s34 = sphi 0, %s34
      %s36 = sphi 0, %s34
      %s37 = sphi 0, %s36
      %s51 = sphi 0, %s37
      %s55 = sphi 0, %s55
      %s57 = sphi 0, %s55
      %s58 = sphi 0, %s57
      %s72 = sphi 0, %s58
      %s78 = sphi 0, %s80
      %s81 = sphi 0, %s78
      %s82 = sphi 0, %s81
      %s98 = sphi 0, %s82
      %s102 = sphi 0, %s102
      %s104 = sphi 0, %s102
      %s105 = sphi 0, %s104
      %s119 = sphi 0, %s105
      %s123 = sphi 0, %s123
      %s125 = sphi 0, %s123
      %s126 = sphi 0, %s125
      %s140 = sphi 0, %s126
      %s144 = sphi 0, %s144
      %s146 = sphi 0, %s144
      %s147 = sphi 0, %s146
      %s161 = sphi 0, %s147
      %s165 = sphi 0, %s165
      %s167 = sphi 0, %s165
      %s168 = sphi 0, %s167
      %s182 = sphi 0, %s168
      %s188 = sphi 0, %s190
      %s191 = sphi 0, %s188
      %s192 = sphi 0, %s191
      %s208 = sphi 0, %s192
      %s214 = sphi 0, %s216
      %s217 = sphi 0, %s214
      %s218 = sphi 0, %s217
      %s234 = sphi 0, %s218
    $region4: #{gsnet_forward.6} parent=1 // loop_header_branch
      %29 = sbr.rel (%p27) target = $region8
    $region5: #{gsnet_forward.6} parent=1 // loop_body
      %s31 = ssub.s32 %s26, 1
      %s32 = ssub.s32 %s26, 2
      %s33 = sadd.s32 %s26, 1
      %s35 = sadd.s32 %s34, 1
      %p38 = scmp.eq.s32.totalorder %s26, 5
      %p39 = scmp.ne.s32.totalorder %s34, %s36
      %p40 = scmp.eq.s32.totalorder %s26, 0
      %p41 = por %p39, %p40
      %p42 = scmp.ne.s32.totalorder %s34, %s36
      %p43 = scmp.eq.s32.totalorder %s31, 5
      %p44 = por %p42, %p43
      %p45 = scmp.ne.s32.totalorder %s36, %s37
      %p46 = scmp.eq.s32.totalorder %s31, 0
      %p47 = por %p45, %p46
      %p48 = scmp.ne.s32.totalorder %s36, %s37
      %p49 = scmp.eq.s32.totalorder %s32, 5
      %p50 = por %p48, %p49
      %p52 = scmp.ne.s32.totalorder %s37, %s51
      %p53 = scmp.eq.s32.totalorder %s32, 0
      %p54 = por %p52, %p53
      %s56 = sadd.s32 %s55, 1
      %p59 = scmp.eq.s32.totalorder %s26, 5
      %p60 = scmp.ne.s32.totalorder %s55, %s57
      %p61 = scmp.eq.s32.totalorder %s26, 0
      %p62 = por %p60, %p61
      %p63 = scmp.ne.s32.totalorder %s55, %s57
      %p64 = scmp.eq.s32.totalorder %s31, 5
      %p65 = por %p63, %p64
      %p66 = scmp.ne.s32.totalorder %s57, %s58
      %p67 = scmp.eq.s32.totalorder %s31, 0
      %p68 = por %p66, %p67
      %p69 = scmp.ne.s32.totalorder %s57, %s58
      %p70 = scmp.eq.s32.totalorder %s32, 5
      %p71 = por %p69, %p70
      %p73 = scmp.ne.s32.totalorder %s58, %s72
      %p74 = scmp.eq.s32.totalorder %s32, 0
      %p75 = por %p73, %p74
      %s76 = ssub.s32 %s26, %s33
      %p77 = scmp.eq.s32.totalorder %s76, 0
      %s79 = sadd.s32 %s78, 1
      %s80 = scalar_select %p77, %s78, %s79
      %p83 = pneg %p77
      %p84 = scmp.eq.s32.totalorder %s26, 5
      %p85 = por %p83, %p84
      %p86 = scmp.ne.s32.totalorder %s78, %s81
      %p87 = scmp.eq.s32.totalorder %s26, 0
      %p88 = por %p86, %p87
      %p89 = scmp.ne.s32.totalorder %s78, %s81
      %p90 = scmp.eq.s32.totalorder %s31, 5
      %p91 = por %p89, %p90
      %p92 = scmp.ne.s32.totalorder %s81, %s82
      %p93 = scmp.eq.s32.totalorder %s31, 0
      %p94 = por %p92, %p93
      %p95 = scmp.ne.s32.totalorder %s81, %s82
      %p96 = scmp.eq.s32.totalorder %s32, 5
      %p97 = por %p95, %p96
      %p99 = scmp.ne.s32.totalorder %s82, %s98
      %p100 = scmp.eq.s32.totalorder %s32, 0
      %p101 = por %p99, %p100
      %s103 = sadd.s32 %s102, 1
      %p106 = scmp.eq.s32.totalorder %s26, 5
      %p107 = scmp.ne.s32.totalorder %s102, %s104
      %p108 = scmp.eq.s32.totalorder %s26, 0
      %p109 = por %p107, %p108
      %p110 = scmp.ne.s32.totalorder %s102, %s104
      %p111 = scmp.eq.s32.totalorder %s31, 5
      %p112 = por %p110, %p111
      %p113 = scmp.ne.s32.totalorder %s104, %s105
      %p114 = scmp.eq.s32.totalorder %s31, 0
      %p115 = por %p113, %p114
      %p116 = scmp.ne.s32.totalorder %s104, %s105
      %p117 = scmp.eq.s32.totalorder %s32, 5
      %p118 = por %p116, %p117
      %p120 = scmp.ne.s32.totalorder %s105, %s119
      %p121 = scmp.eq.s32.totalorder %s32, 0
      %p122 = por %p120, %p121
      %s124 = sadd.s32 %s123, 1
      %p127 = scmp.eq.s32.totalorder %s26, 5
      %p128 = scmp.ne.s32.totalorder %s123, %s125
      %p129 = scmp.eq.s32.totalorder %s26, 0
      %p130 = por %p128, %p129
      %p131 = scmp.ne.s32.totalorder %s123, %s125
      %p132 = scmp.eq.s32.totalorder %s31, 5
      %p133 = por %p131, %p132
      %p134 = scmp.ne.s32.totalorder %s125, %s126
      %p135 = scmp.eq.s32.totalorder %s31, 0
      %p136 = por %p134, %p135
      %p137 = scmp.ne.s32.totalorder %s125, %s126
      %p138 = scmp.eq.s32.totalorder %s32, 5
      %p139 = por %p137, %p138
      %p141 = scmp.ne.s32.totalorder %s126, %s140
      %p142 = scmp.eq.s32.totalorder %s32, 0
      %p143 = por %p141, %p142
      %s145 = sadd.s32 %s144, 1
      %p148 = scmp.eq.s32.totalorder %s26, 5
      %p149 = scmp.ne.s32.totalorder %s144, %s146
      %p150 = scmp.eq.s32.totalorder %s26, 0
      %p151 = por %p149, %p150
      %p152 = scmp.ne.s32.totalorder %s144, %s146
      %p153 = scmp.eq.s32.totalorder %s31, 5
      %p154 = por %p152, %p153
      %p155 = scmp.ne.s32.totalorder %s146, %s147
      %p156 = scmp.eq.s32.totalorder %s31, 0
      %p157 = por %p155, %p156
      %p158 = scmp.ne.s32.totalorder %s146, %s147
      %p159 = scmp.eq.s32.totalorder %s32, 5
      %p160 = por %p158, %p159
      %p162 = scmp.ne.s32.totalorder %s147, %s161
      %p163 = scmp.eq.s32.totalorder %s32, 0
      %p164 = por %p162, %p163
      %s166 = sadd.s32 %s165, 1
      %p169 = scmp.eq.s32.totalorder %s26, 5
      %p170 = scmp.ne.s32.totalorder %s165, %s167
      %p171 = scmp.eq.s32.totalorder %s26, 0
      %p172 = por %p170, %p171
      %p173 = scmp.ne.s32.totalorder %s165, %s167
      %p174 = scmp.eq.s32.totalorder %s31, 5
      %p175 = por %p173, %p174
      %p176 = scmp.ne.s32.totalorder %s167, %s168
      %p177 = scmp.eq.s32.totalorder %s31, 0
      %p178 = por %p176, %p177
      %p179 = scmp.ne.s32.totalorder %s167, %s168
      %p180 = scmp.eq.s32.totalorder %s32, 5
      %p181 = por %p179, %p180
      %p183 = scmp.ne.s32.totalorder %s168, %s182
      %p184 = scmp.eq.s32.totalorder %s32, 0
      %p185 = por %p183, %p184
      %s186 = ssub.s32 %s26, %s33
      %p187 = scmp.eq.s32.totalorder %s186, 0
      %s189 = sadd.s32 %s188, 1
      %s190 = scalar_select %p187, %s188, %s189
      %p193 = pneg %p187
      %p194 = scmp.eq.s32.totalorder %s26, 5
      %p195 = por %p193, %p194
      %p196 = scmp.ne.s32.totalorder %s188, %s191
      %p197 = scmp.eq.s32.totalorder %s26, 0
      %p198 = por %p196, %p197
      %p199 = scmp.ne.s32.totalorder %s188, %s191
      %p200 = scmp.eq.s32.totalorder %s31, 5
      %p201 = por %p199, %p200
      %p202 = scmp.ne.s32.totalorder %s191, %s192
      %p203 = scmp.eq.s32.totalorder %s31, 0
      %p204 = por %p202, %p203
      %p205 = scmp.ne.s32.totalorder %s191, %s192
      %p206 = scmp.eq.s32.totalorder %s32, 5
      %p207 = por %p205, %p206
      %p209 = scmp.ne.s32.totalorder %s192, %s208
      %p210 = scmp.eq.s32.totalorder %s32, 0
      %p211 = por %p209, %p210
      %s212 = ssub.s32 %s26, %s33
      %p213 = scmp.eq.s32.totalorder %s212, 0
      %s215 = sadd.s32 %s214, 1
      %s216 = scalar_select %p213, %s214, %s215
      %p219 = pneg %p213
      %p220 = scmp.eq.s32.totalorder %s26, 5
      %p221 = por %p219, %p220
      %p222 = scmp.ne.s32.totalorder %s214, %s217
      %p223 = scmp.eq.s32.totalorder %s26, 0
      %p224 = por %p222, %p223
      %p225 = scmp.ne.s32.totalorder %s214, %s217
      %p226 = scmp.eq.s32.totalorder %s31, 5
      %p227 = por %p225, %p226
      %p228 = scmp.ne.s32.totalorder %s217, %s218
      %p229 = scmp.eq.s32.totalorder %s31, 0
      %p230 = por %p228, %p229
      %p231 = scmp.ne.s32.totalorder %s217, %s218
      %p232 = scmp.eq.s32.totalorder %s32, 5
      %p233 = por %p231, %p232
      %p235 = scmp.ne.s32.totalorder %s218, %s234
      %p236 = scmp.eq.s32.totalorder %s32, 0
      %p237 = por %p235, %p236
      %p238 = scmp.le.s32.totalorder 1, %s26
      %p239 = scmp.lt.s32.totalorder %s26, 7
      %p240 = pnand %p238, %p239
      %p241 = pneg %p240
      // Predicated region
      $region9: #{gsnet_forward.6} parent=5 // pred_check
        _
      $region10: #{gsnet_forward.6} parent=5 // pred_check_branch
        %243 = sbr.rel (%p240) target = $region12
      $region11: #{gsnet_forward.6} parent=5 // pred_region
        %s244 = ssub.s32 %s26, 1
        // Predicated region
        $region13: #{gsnet_forward.6} parent=11 // pred_check
          %p245 = pneg %p47
        $region14: #{gsnet_forward.6} parent=11 // pred_check_branch
          %247 = sbr.rel (%p245) target = $region16
        $region15: #{gsnet_forward.6} parent=11 // pred_region
          %249 = vsyncadd [#allocation5], 0
          %s251 = sshll.u32 %s0, 4
          %s252 = int_to_ptr.vmem [resolvable:$true] %s251
          %254 = dma.vmem_to_smem %s252, 16, [#allocation2], [#allocation5]
        $region16: #{gsnet_forward.6} parent=11 // pred_fallthru
          _
        // Predicated region
        $region17: #{gsnet_forward.6} parent=11 // pred_check
          %p255 = pneg %p68
        $region18: #{gsnet_forward.6} parent=11 // pred_check_branch
          %257 = sbr.rel (%p255) target = $region20
        $region19: #{gsnet_forward.6} parent=11 // pred_region
          %259 = vsyncadd [#allocation7], 0
          %s261 = sshll.u32 %s1, 4
          %s262 = int_to_ptr.vmem [resolvable:$true] %s261
          %264 = dma.vmem_to_smem %s262, 16, [#allocation6], [#allocation7]
        $region20: #{gsnet_forward.6} parent=11 // pred_fallthru
          _
        // Predicated region
        $region21: #{gsnet_forward.6} parent=11 // pred_check
          %p265 = pneg %p115
        $region22: #{gsnet_forward.6} parent=11 // pred_check_branch
          %267 = sbr.rel (%p265) target = $region24
        $region23: #{gsnet_forward.6} parent=11 // pred_region
          _
        $region24: #{gsnet_forward.6} parent=11 // pred_fallthru
          _
        // Predicated region
        $region25: #{gsnet_forward.6} parent=11 // pred_check
          %p268 = pneg %p136
        $region26: #{gsnet_forward.6} parent=11 // pred_check_branch
          %270 = sbr.rel (%p268) target = $region28
        $region27: #{gsnet_forward.6} parent=11 // pred_region
          _
        $region28: #{gsnet_forward.6} parent=11 // pred_fallthru
          _
        // Predicated region
        $region29: #{gsnet_forward.6} parent=11 // pred_check
          %p271 = pneg %p157
        $region30: #{gsnet_forward.6} parent=11 // pred_check_branch
          %273 = sbr.rel (%p271) target = $region32
        $region31: #{gsnet_forward.6} parent=11 // pred_region
          _
        $region32: #{gsnet_forward.6} parent=11 // pred_fallthru
          _
        // Predicated region
        $region33: #{gsnet_forward.6} parent=11 // pred_check
          %p274 = pneg %p178
        $region34: #{gsnet_forward.6} parent=11 // pred_check_branch
          %276 = sbr.rel (%p274) target = $region36
        $region35: #{gsnet_forward.6} parent=11 // pred_region
          _
        $region36: #{gsnet_forward.6} parent=11 // pred_fallthru
          _
      $region12: #{gsnet_forward.6} parent=5 // pred_fallthru
        _
      %p277 = scmp.lt.s32.totalorder %s26, 6
      // Predicated region
      $region37: #{gsnet_forward.6} parent=5 // pred_check
        %p278 = pneg %p277
      $region38: #{gsnet_forward.6} parent=5 // pred_check_branch
        %280 = sbr.rel (%p278) target = $region40
      $region39: #{gsnet_forward.6} parent=5 // pred_region
        // Predicated region
        $region41: #{gsnet_forward.6} parent=39 // pred_check
          %p281 = pneg %p88
        $region42: #{gsnet_forward.6} parent=39 // pred_check_branch
          %283 = sbr.rel (%p281) target = $region44
        $region43: #{gsnet_forward.6} parent=39 // pred_region
          %s284 = sand.u32 %s78, 1
          %s285 = scalar_lea.sflag [#allocation3], %s284
          %s286 = sand.u32 %s78, 1
          %s287 = smul.addr %s286, 32
          %s288 = scalar_lea.vmem [#allocation8], %s287
          %290 = vsyncadd %s285, 0
          %s291 = smul.addr %s26, 4
          %s292 = smul.addr %s291, 8
          %s293 = scalar_lea.hbm %s2, %s292
          %s294 = sshll.u32 %s293, 4
          %s295 = int_to_ptr.hbm [resolvable:$true] %s294
          %s296 = sshll.u32 %s288, 4
          %s297 = int_to_ptr.vmem [resolvable:$true] %s296
          %302 = dma.hbm_to_vmem [thread:$0]  %s295, 512, %s297, %s285, 128, 128, 8
        $region44: #{gsnet_forward.6} parent=39 // pred_fallthru
          _
      $region40: #{gsnet_forward.6} parent=5 // pred_fallthru
        _
      %p303 = scmp.le.s32.totalorder 1, %s26
      %p304 = scmp.lt.s32.totalorder %s26, 7
      %p305 = pnand %p303, %p304
      %p306 = pneg %p305
      // Predicated region
      $region45: #{gsnet_forward.6} parent=5 // pred_check
        _
      $region46: #{gsnet_forward.6} parent=5 // pred_check_branch
        %308 = sbr.rel (%p305) target = $region48
      $region47: #{gsnet_forward.6} parent=5 // pred_region
        %s309 = ssub.s32 %s26, 1
        // Predicated region
        $region49: #{gsnet_forward.6} parent=47 // pred_check
          %p310 = pneg %p47
        $region50: #{gsnet_forward.6} parent=47 // pred_check_branch
          %312 = sbr.rel (%p310) target = $region52
        $region51: #{gsnet_forward.6} parent=47 // pred_region
          %314 = dma.done [#allocation5], 16
        $region52: #{gsnet_forward.6} parent=47 // pred_fallthru
          _
        // Predicated region
        $region53: #{gsnet_forward.6} parent=47 // pred_check
          %p315 = pneg %p68
        $region54: #{gsnet_forward.6} parent=47 // pred_check_branch
          %317 = sbr.rel (%p315) target = $region56
        $region55: #{gsnet_forward.6} parent=47 // pred_region
          %319 = dma.done [#allocation7], 16
        $region56: #{gsnet_forward.6} parent=47 // pred_fallthru
          _
        %s320 = sand.u32 %s81, 1
        %s321 = scalar_lea.sflag [#allocation3], %s320
        %s322 = sand.u32 %s81, 1
        %s323 = smul.addr %s322, 32
        %s324 = scalar_lea.vmem [#allocation8], %s323
        // Predicated region
        $region57: #{gsnet_forward.6} parent=47 // pred_check
          %p325 = pneg %p94
        $region58: #{gsnet_forward.6} parent=47 // pred_check_branch
          %327 = sbr.rel (%p325) target = $region60
        $region59: #{gsnet_forward.6} parent=47 // pred_region
          %329 = dma.done %s321, 512
        $region60: #{gsnet_forward.6} parent=47 // pred_fallthru
          _
        %330 = sfence
        %p331 = pneg %p47
        %p332 = pneg %p44
        %p333 = pneg %p68
        %p334 = pneg %p65
        %s335 = sand.u32 %s81, 1
        %s336 = scalar_lea.sflag [#allocation3], %s335
        %s337 = sand.u32 %s81, 1
        %s338 = smul.addr %s337, 32
        %s339 = scalar_lea.vmem [#allocation8], %s338
        %p340 = pneg %p94
        %p341 = pneg %p91
        %p342 = pneg %p115
        %p343 = pneg %p112
        %p344 = pneg %p136
        %p345 = pneg %p133
        %p346 = pneg %p157
        %p347 = pneg %p154
        %p348 = pneg %p178
        %p349 = pneg %p175
        %p350 = pneg %p204
        %p351 = pneg %p201
        %s352 = sand.u32 %s191, 1
        %s353 = scalar_lea.sflag [#allocation4], %s352
        %s354 = sand.u32 %s191, 1
        %s355 = smul.addr %s354, 16
        %s356 = scalar_lea.vmem [#allocation9], %s355
        %p357 = pneg %p230
        %p358 = pneg %p227
        %s359 = sand.u32 %s217, 1
        %s360 = scalar_lea.sflag [#allocation11], %s359
        %s361 = sand.u32 %s217, 1
        %s362 = smul.addr %s361, 16
        %s363 = scalar_lea.vmem [#allocation10], %s362
        %p365 = scmp.lt.s32.totalorder %s31, 0
        %s366 = ssub.s32 0, %s31
        %s367 = scalar_select %p365, %s366, %s31
        %s368 = sdiv.u32.pop %s367, 3
        %s369 = srem.u32.pop %s367, 3
        %s370 = ssub.s32 0, %s369
        %s371 = scalar_select %p365, %s370, %s369
        %s372 = sld [smem:[#allocation2 + %s371]]
        %s373 = sld [smem:[#allocation6 + %s371]]
        %v374 = vld [vmem:[%s324] sm:$0xff]
        %v375 = vld [vmem:[%s324 + $0x8] sm:$0xff]
        %v376 = vld [vmem:[%s324 + $0x10] sm:$0xff]
        %v377 = vld [vmem:[%s324 + $0x18] sm:$0xff]
        %v378 = vpack.c.bf16 %v375, %v374
        %v379 = vpack.c.bf16 %v377, %v376
        %v380 = vld [vmem:[%s3] sm:$0xf]
        %v381 = vld [vmem:[%s3 + $0x4] sm:$0xf]
        %v384 = vunpack.c.l.b16 %v380
        %v385 = vunpack.c.l.b16 %v381
        %v386 = vpack.c.b16 %v385, %v384
        %vm387 = vcmask 261120
        %v389 = vsel %vm387, %v386, 0
        %391 = vmatpush.bf16.msra.mxu0 0
        %392 = vmatpush.bf16.msra.mxu0 0
        %393 = vmatpush.bf16.msra.mxu0 0
        %394 = vmatpush.bf16.msra.mxu0 0
        %395 = vmatpush.bf16.msra.mxu0 0
        %396 = vmatpush.bf16.msra.mxu0 0
        %397 = vmatpush.bf16.msra.mxu0 %v379
        %398 = vmatpush.bf16.msra.mxu0 %v378
        %399 = vmatmul.bf16.gmra.mxu0 %v389
        %v400 = vpop.f32.mrf.mxu0
        %v401 = vadd.f32 0.0, %v400
        %v402 = vpop.f32.mrf.mxu0
        %v403 = vadd.f32 0.0, %v402
        %404 = vdwg.mxu0
        %v405 = vpack.c.bf16 %v403, %v401
        %v406 = vld [vmem:[%s4] sm:$0xf]
        %v407 = vld [vmem:[%s4 + $0x4] sm:$0xf]
        %v408 = vld [vmem:[%s4 + $0x8] sm:$0xf]
        %v409 = vld [vmem:[%s4 + $0xc] sm:$0xf]
        %v414 = vunpack.c.l.b16 %v406
        %v415 = vunpack.c.l.b16 %v407
        %v416 = vunpack.c.l.b16 %v408
        %v417 = vunpack.c.l.b16 %v409
        %v418 = vpack.c.b16 %v415, %v414
        %v419 = vpack.c.b16 %v417, %v416
        %v423 = vsel %vm387, %v405, 0
        %425 = vmatpush.bf16.msra.mxu0 0
        %426 = vmatpush.bf16.msra.mxu0 0
        %427 = vmatpush.bf16.msra.mxu0 0
        %428 = vmatpush.bf16.msra.mxu0 0
        %429 = vmatpush.bf16.msra.mxu0 0
        %430 = vmatpush.bf16.msra.mxu0 0
        %431 = vmatpush.bf16.msra.mxu0 %v419
        %432 = vmatpush.bf16.msra.mxu0 %v418
        %433 = vmatmul.bf16.gmra.mxu0 %v423
        %v434 = vpop.f32.mrf.mxu0
        %v435 = vadd.f32 0.0, %v434
        %v436 = vpop.f32.mrf.mxu0
        %v437 = vadd.f32 0.0, %v436
        %438 = vdwg.mxu0
        %v439 = vstv %s372
        %v440 = vmul.f32 %v435, %v439
        %v441 = vmul.f32 %v437, %v439
        %v442 = vstv %s373
        %v443 = vadd.f32 %v440, %v442
        %v444 = vadd.f32 %v441, %v442
        %vm445 = vcmask 130048
        %446 = vst.msk [vmem:[%s356] sm:$0xff] %vm445, %v443
        %447 = vst.msk [vmem:[%s356 + $0x8] sm:$0xff] %vm445, %v444
        %v448 = vld [vmem:[%s5] sm:$0xf]
        %v449 = vld [vmem:[%s5 + $0x4] sm:$0xf]
        %v452 = vunpack.c.l.b16 %v448
        %v453 = vunpack.c.l.b16 %v449
        %v454 = vpack.c.b16 %v453, %v452
        %v456 = vsel %vm387, %v454, 0
        %458 = vmatpush.bf16.msra.mxu0 0
        %459 = vmatpush.bf16.msra.mxu0 0
        %460 = vmatpush.bf16.msra.mxu0 0
        %461 = vmatpush.bf16.msra.mxu0 0
        %462 = vmatpush.bf16.msra.mxu0 0
        %463 = vmatpush.bf16.msra.mxu0 0
        %464 = vmatpush.bf16.msra.mxu0 %v379
        %465 = vmatpush.bf16.msra.mxu0 %v378
        %466 = vmatmul.bf16.gmra.mxu0 %v456
        %v467 = vpop.f32.mrf.mxu0
        %v468 = vadd.f32 0.0, %v467
        %v469 = vpop.f32.mrf.mxu0
        %v470 = vadd.f32 0.0, %v469
        %471 = vdwg.mxu0
        %v472 = vpack.c.bf16 %v470, %v468
        %v473 = vld [vmem:[%s6] sm:$0xf]
        %v474 = vld [vmem:[%s6 + $0x4] sm:$0xf]
        %v475 = vld [vmem:[%s6 + $0x8] sm:$0xf]
        %v476 = vld [vmem:[%s6 + $0xc] sm:$0xf]
        %v481 = vunpack.c.l.b16 %v473
        %v482 = vunpack.c.l.b16 %v474
        %v483 = vunpack.c.l.b16 %v475
        %v484 = vunpack.c.l.b16 %v476
        %v485 = vpack.c.b16 %v482, %v481
        %v486 = vpack.c.b16 %v484, %v483
        %v490 = vsel %vm387, %v472, 0
        %492 = vmatpush.bf16.msra.mxu0 0
        %493 = vmatpush.bf16.msra.mxu0 0
        %494 = vmatpush.bf16.msra.mxu0 0
        %495 = vmatpush.bf16.msra.mxu0 0
        %496 = vmatpush.bf16.msra.mxu0 0
        %497 = vmatpush.bf16.msra.mxu0 0
        %498 = vmatpush.bf16.msra.mxu0 %v486
        %499 = vmatpush.bf16.msra.mxu0 %v485
        %500 = vmatmul.bf16.gmra.mxu0 %v490
        %v501 = vpop.f32.mrf.mxu0
        %v502 = vadd.f32 0.0, %v501
        %v503 = vpop.f32.mrf.mxu0
        %v504 = vadd.f32 0.0, %v503
        %505 = vdwg.mxu0
        %v506 = vmul.f32 %v502, %v439
        %v507 = vmul.f32 %v504, %v439
        %v508 = vadd.f32 %v506, %v442
        %v509 = vadd.f32 %v507, %v442
        %510 = vst.msk [vmem:[%s363] sm:$0xff] %vm445, %v508
        %511 = vst.msk [vmem:[%s363 + $0x8] sm:$0xff] %vm445, %v509
        %s512 = sand.u32 %s191, 1
        %s513 = scalar_lea.sflag [#allocation4], %s512
        %s514 = sand.u32 %s191, 1
        %s515 = smul.addr %s514, 16
        %s516 = scalar_lea.vmem [#allocation9], %s515
        %s517 = sand.u32 %s217, 1
        %s518 = scalar_lea.sflag [#allocation11], %s517
        %s519 = sand.u32 %s217, 1
        %s520 = smul.addr %s519, 16
        %s521 = scalar_lea.vmem [#allocation10], %s520
        // Predicated region
        $region61: #{gsnet_forward.6} parent=47 // pred_check
          %p522 = pneg %p201
        $region62: #{gsnet_forward.6} parent=47 // pred_check_branch
          %524 = sbr.rel (%p522) target = $region64
        $region63: #{gsnet_forward.6} parent=47 // pred_region
          %526 = vsyncadd %s513, 0
          %s527 = smul.addr %s31, 2
          %s528 = smul.addr %s527, 8
          %s529 = scalar_lea.hbm %s7, %s528
          %s530 = sshll.u32 %s516, 4
          %s531 = int_to_ptr.vmem [resolvable:$true] %s530
          %s532 = sshll.u32 %s529, 4
          %s533 = int_to_ptr.hbm [resolvable:$true] %s532
          %538 = dma.vmem_to_hbm [thread:$0]  %s531, 256, %s533, %s513, 128, 128, 8
        $region64: #{gsnet_forward.6} parent=47 // pred_fallthru
          _
        // Predicated region
        $region65: #{gsnet_forward.6} parent=47 // pred_check
          %p539 = pneg %p227
        $region66: #{gsnet_forward.6} parent=47 // pred_check_branch
          %541 = sbr.rel (%p539) target = $region68
        $region67: #{gsnet_forward.6} parent=47 // pred_region
          %543 = vsyncadd %s518, 0
          %s544 = smul.addr %s31, 2
          %s545 = smul.addr %s544, 8
          %s546 = scalar_lea.hbm %s8, %s545
          %s547 = sshll.u32 %s521, 4
          %s548 = int_to_ptr.vmem [resolvable:$true] %s547
          %s549 = sshll.u32 %s546, 4
          %s550 = int_to_ptr.hbm [resolvable:$true] %s549
          %555 = dma.vmem_to_hbm [thread:$0]  %s548, 256, %s550, %s518, 128, 128, 8
        $region68: #{gsnet_forward.6} parent=47 // pred_fallthru
          _
      $region48: #{gsnet_forward.6} parent=5 // pred_fallthru
        _
      %p556 = scmp.le.s32.totalorder 2, %s26
      // Predicated region
      $region69: #{gsnet_forward.6} parent=5 // pred_check
        %p557 = pneg %p556
      $region70: #{gsnet_forward.6} parent=5 // pred_check_branch
        %559 = sbr.rel (%p557) target = $region72
      $region71: #{gsnet_forward.6} parent=5 // pred_region
        %s560 = ssub.s32 %s26, 2
        // Predicated region
        $region73: #{gsnet_forward.6} parent=71 // pred_check
          %p561 = pneg %p207
        $region74: #{gsnet_forward.6} parent=71 // pred_check_branch
          %563 = sbr.rel (%p561) target = $region76
        $region75: #{gsnet_forward.6} parent=71 // pred_region
          %s564 = sand.u32 %s192, 1
          %s565 = scalar_lea.sflag [#allocation4], %s564
          %s566 = sand.u32 %s192, 1
          %s567 = smul.addr %s566, 16
          %s568 = scalar_lea.vmem [#allocation9], %s567
          %570 = dma.done %s565, 256
        $region76: #{gsnet_forward.6} parent=71 // pred_fallthru
          _
        // Predicated region
        $region77: #{gsnet_forward.6} parent=71 // pred_check
          %p571 = pneg %p233
        $region78: #{gsnet_forward.6} parent=71 // pred_check_branch
          %573 = sbr.rel (%p571) target = $region80
        $region79: #{gsnet_forward.6} parent=71 // pred_region
          %s574 = sand.u32 %s218, 1
          %s575 = scalar_lea.sflag [#allocation11], %s574
          %s576 = sand.u32 %s218, 1
          %s577 = smul.addr %s576, 16
          %s578 = scalar_lea.vmem [#allocation10], %s577
          %580 = dma.done %s575, 256
        $region80: #{gsnet_forward.6} parent=71 // pred_fallthru
          _
      $region72: #{gsnet_forward.6} parent=5 // pred_fallthru
        _
    $region6: #{gsnet_forward.6} parent=1 // loop_footer
      %s30 = sadd.s32 1, %s26
    $region7: #{gsnet_forward.6} parent=1 // loop_footer_branch
      %25 = sbr.rel target = $region3
    $region8: #{gsnet_forward.6} parent=1 // loop_exit
      _
    %581 = vsyncpa [#allocation3], 1
    %s582 = scalar_lea.sflag [#allocation3], 1
    %583 = vsyncpa %s582, 1
    %584 = vsyncpa [#allocation4], 1
    %s585 = scalar_lea.sflag [#allocation4], 1
    %586 = vsyncpa %s585, 1
    %587 = vsyncpa [#allocation11], 1
    %s588 = scalar_lea.sflag [#allocation11], 1
    %589 = vsyncpa %s588, 1
    %590 = vsyncpa [#allocation5], 1
    %s591 = scalar_lea.sflag [#allocation5], 1
    %592 = vsyncpa %s591, 1
    %593 = vsyncpa [#allocation7], 1

// kernel: gsnet_forward.7
$region0: #{gsnet_forward.7}
  #allocation0 [shape = 'u32[]', space=smem, size = 0x4, offset = 0x4, fixed_abs, tag = 'smem constant byte address 0x4 - core index']
  #allocation1 [shape = 'u32[72,128]{1,0:T(1,128)}', space=vmem, size = 0x9000, scoped, tag = 'internal scratch']
  %s0 = inlined_call_operand.vmem [shape: bf16[32,256], index: 0, kind: input, shape index: {}]
  %s1 = inlined_call_operand.vmem [shape: bf16[256,128], index: 1, kind: input, shape index: {}]
  %s2 = inlined_call_operand.vmem [shape: f32[1,128], index: 2, kind: input, shape index: {}]
  %s3 = inlined_call_operand.vmem [shape: bf16[128,128], index: 3, kind: input, shape index: {}]
  %s4 = inlined_call_operand.vmem [shape: f32[1,128], index: 4, kind: input, shape index: {}]
  %s5 = inlined_call_operand.hbm [shape: bf16[32,128], index: 5, kind: output, shape index: {0}]
  %s6 = inlined_call_operand.hbm [shape: f32[32,128], index: 6, kind: output, shape index: {1}]
  %7 = xla_tuple %s5, %s6
  %s8 = sld [smem:[#allocation0]]
  $region38: #{gsnet_forward.7} parent=0
    _
  %s10 = ssub.s32 1, %s8
  %s11 = scalar_select 0, %s10, %s8
  $region1: #{gsnet_forward.7} parent=0
    #allocation2 [shape = 'u8[8192]{0}', space=vmem, size = 0x2000, scoped, tag = 'output window, operand 0, single buffered']
    #allocation3 [shape = 's32[1]{0}', space=sflag, size = 0x4, scoped, tag = 'scoped memory for gsnet_forward.7']
    #allocation4 [shape = 'u8[16384]{0}', space=vmem, size = 0x4000, scoped, tag = 'output window, operand 1, single buffered']
    #allocation5 [shape = 's32[1]{0}', space=sflag, size = 0x4, scoped, tag = 'scoped memory for gsnet_forward.7']
    %12 = vsyncpa [#allocation3], 0
    %13 = vsyncpa [#allocation5], 0
    // Predicated region
    $region2: #{gsnet_forward.7} parent=1 // pred_check
      _
    $region3: #{gsnet_forward.7} parent=1 // pred_check_branch
      %15 = sbr.rel (0) target = $region5
    $region4: #{gsnet_forward.7} parent=1 // pred_region
      _
    $region5: #{gsnet_forward.7} parent=1 // pred_fallthru
      _
    // Predicated region
    $region6: #{gsnet_forward.7} parent=1 // pred_check
      _
    $region7: #{gsnet_forward.7} parent=1 // pred_check_branch
      %17 = sbr.rel (0) target = $region9
    $region8: #{gsnet_forward.7} parent=1 // pred_region
      _
    $region9: #{gsnet_forward.7} parent=1 // pred_fallthru
      _
    // Predicated region
    $region10: #{gsnet_forward.7} parent=1 // pred_check
      _
    $region11: #{gsnet_forward.7} parent=1 // pred_check_branch
      %19 = sbr.rel (0) target = $region13
    $region12: #{gsnet_forward.7} parent=1 // pred_region
      _
    $region13: #{gsnet_forward.7} parent=1 // pred_fallthru
      _
    // Predicated region
    $region14: #{gsnet_forward.7} parent=1 // pred_check
      _
    $region15: #{gsnet_forward.7} parent=1 // pred_check_branch
      %21 = sbr.rel (0) target = $region17
    $region16: #{gsnet_forward.7} parent=1 // pred_region
      _
    $region17: #{gsnet_forward.7} parent=1 // pred_fallthru
      _
    // Predicated region
    $region18: #{gsnet_forward.7} parent=1 // pred_check
      _
    $region19: #{gsnet_forward.7} parent=1 // pred_check_branch
      %23 = sbr.rel (0) target = $region21
    $region20: #{gsnet_forward.7} parent=1 // pred_region
      _
    $region21: #{gsnet_forward.7} parent=1 // pred_fallthru
      _
    %v24 = vld [vmem:[%s0] sm:$0xff]
    %v25 = vld [vmem:[%s0 + $0x8] sm:$0xff]
    %v26 = vld [vmem:[%s0 + $0x10] sm:$0xff]
    %v27 = vld [vmem:[%s0 + $0x18] sm:$0xff]
    %v28 = vld [vmem:[%s1] sm:$0xf]
    %v29 = vld [vmem:[%s1 + $0x4] sm:$0xf]
    %v30 = vld [vmem:[%s1 + $0x8] sm:$0xf]
    %v31 = vld [vmem:[%s1 + $0xc] sm:$0xf]
    %v32 = vld [vmem:[%s1 + $0x10] sm:$0xf]
    %v33 = vld [vmem:[%s1 + $0x14] sm:$0xf]
    %v34 = vld [vmem:[%s1 + $0x18] sm:$0xf]
    %v35 = vld [vmem:[%s1 + $0x1c] sm:$0xf]
    %v36 = vld [vmem:[%s1 + $0x20] sm:$0xf]
    %v37 = vld [vmem:[%s1 + $0x24] sm:$0xf]
    %v38 = vld [vmem:[%s1 + $0x28] sm:$0xf]
    %v39 = vld [vmem:[%s1 + $0x2c] sm:$0xf]
    %v40 = vld [vmem:[%s1 + $0x30] sm:$0xf]
    %v41 = vld [vmem:[%s1 + $0x34] sm:$0xf]
    %v42 = vld [vmem:[%s1 + $0x38] sm:$0xf]
    %v43 = vld [vmem:[%s1 + $0x3c] sm:$0xf]
    %v44 = vld [vmem:[%s1 + $0x40] sm:$0xf]
    %v45 = vld [vmem:[%s1 + $0x44] sm:$0xf]
    %v46 = vld [vmem:[%s1 + $0x48] sm:$0xf]
    %v47 = vld [vmem:[%s1 + $0x4c] sm:$0xf]
    %v48 = vld [vmem:[%s1 + $0x50] sm:$0xf]
    %v49 = vld [vmem:[%s1 + $0x54] sm:$0xf]
    %v50 = vld [vmem:[%s1 + $0x58] sm:$0xf]
    %v51 = vld [vmem:[%s1 + $0x5c] sm:$0xf]
    %v52 = vld [vmem:[%s1 + $0x60] sm:$0xf]
    %v53 = vld [vmem:[%s1 + $0x64] sm:$0xf]
    %v54 = vld [vmem:[%s1 + $0x68] sm:$0xf]
    %v55 = vld [vmem:[%s1 + $0x6c] sm:$0xf]
    %v56 = vld [vmem:[%s1 + $0x70] sm:$0xf]
    %v57 = vld [vmem:[%s1 + $0x74] sm:$0xf]
    %v58 = vld [vmem:[%s1 + $0x78] sm:$0xf]
    %v59 = vld [vmem:[%s1 + $0x7c] sm:$0xf]
    %v60 = vld [vmem:[%s2] sm:$0x1]
    %v62 = vperm.slane %v60, 0
    %v68 = vunpack.c.l.b16 %v24
    %v69 = vunpack.c.h.b16 %v24
    %v70 = vunpack.c.l.b16 %v25
    %v71 = vunpack.c.h.b16 %v25
    %v72 = vunpack.c.l.b16 %v26
    %v73 = vunpack.c.h.b16 %v26
    %v74 = vunpack.c.l.b16 %v27
    %v75 = vunpack.c.h.b16 %v27
    %v76 = vpack.c.b16 %v70, %v68
    %v77 = vpack.c.b16 %v71, %v69
    %v78 = vpack.c.b16 %v74, %v72
    %v79 = vpack.c.b16 %v75, %v73
    %v116 = vunpack.c.l.b16 %v28
    %v117 = vunpack.c.l.b16 %v29
    %v118 = vunpack.c.l.b16 %v30
    %v119 = vunpack.c.l.b16 %v31
    %v120 = vunpack.c.l.b16 %v32
    %v121 = vunpack.c.l.b16 %v33
    %v122 = vunpack.c.l.b16 %v34
    %v123 = vunpack.c.l.b16 %v35
    %v124 = vunpack.c.l.b16 %v36
    %v125 = vunpack.c.l.b16 %v37
    %v126 = vunpack.c.l.b16 %v38
    %v127 = vunpack.c.l.b16 %v39
    %v128 = vunpack.c.l.b16 %v40
    %v129 = vunpack.c.l.b16 %v41
    %v130 = vunpack.c.l.b16 %v42
    %v131 = vunpack.c.l.b16 %v43
    %v132 = vunpack.c.l.b16 %v44
    %v133 = vunpack.c.l.b16 %v45
    %v134 = vunpack.c.l.b16 %v46
    %v135 = vunpack.c.l.b16 %v47
    %v136 = vunpack.c.l.b16 %v48
    %v137 = vunpack.c.l.b16 %v49
    %v138 = vunpack.c.l.b16 %v50
    %v139 = vunpack.c.l.b16 %v51
    %v140 = vunpack.c.l.b16 %v52
    %v141 = vunpack.c.l.b16 %v53
    %v142 = vunpack.c.l.b16 %v54
    %v143 = vunpack.c.l.b16 %v55
    %v144 = vunpack.c.l.b16 %v56
    %v145 = vunpack.c.l.b16 %v57
    %v146 = vunpack.c.l.b16 %v58
    %v147 = vunpack.c.l.b16 %v59
    %v148 = vpack.c.b16 %v117, %v116
    %v149 = vpack.c.b16 %v119, %v118
    %v150 = vpack.c.b16 %v121, %v120
    %v151 = vpack.c.b16 %v123, %v122
    %v152 = vpack.c.b16 %v125, %v124
    %v153 = vpack.c.b16 %v127, %v126
    %v154 = vpack.c.b16 %v129, %v128
    %v155 = vpack.c.b16 %v131, %v130
    %v156 = vpack.c.b16 %v133, %v132
    %v157 = vpack.c.b16 %v135, %v134
    %v158 = vpack.c.b16 %v137, %v136
    %v159 = vpack.c.b16 %v139, %v138
    %v160 = vpack.c.b16 %v141, %v140
    %v161 = vpack.c.b16 %v143, %v142
    %v162 = vpack.c.b16 %v145, %v144
    %v163 = vpack.c.b16 %v147, %v146
    %180 = vmatpush.bf16.msra.mxu0 %v155
    %181 = vmatpush.bf16.msra.mxu0 %v154
    %182 = vmatpush.bf16.msra.mxu0 %v153
    %183 = vmatpush.bf16.msra.mxu0 %v152
    %184 = vmatpush.bf16.msra.mxu0 %v151
    %185 = vmatpush.bf16.msra.mxu0 %v150
    %186 = vmatpush.bf16.msra.mxu0 %v149
    %187 = vmatpush.bf16.msra.mxu0 %v148
    %188 = vmatmul.bf16.gmra.mxu0 %v76
    %v189 = vpop.f32.mrf.mxu0
    %v190 = vadd.f32 %v62, %v189
    %v191 = vpop.f32.mrf.mxu0
    %v192 = vadd.f32 %v62, %v191
    %193 = vmatmul.bf16.gmra.mxu0 %v78
    %v194 = vpop.f32.mrf.mxu0
    %v195 = vadd.f32 %v62, %v194
    %v196 = vpop.f32.mrf.mxu0
    %v197 = vadd.f32 %v62, %v196
    %198 = vdwg.mxu0
    %199 = vmatpush.bf16.msra.mxu0 %v163
    %200 = vmatpush.bf16.msra.mxu0 %v162
    %201 = vmatpush.bf16.msra.mxu0 %v161
    %202 = vmatpush.bf16.msra.mxu0 %v160
    %203 = vmatpush.bf16.msra.mxu0 %v159
    %204 = vmatpush.bf16.msra.mxu0 %v158
    %205 = vmatpush.bf16.msra.mxu0 %v157
    %206 = vmatpush.bf16.msra.mxu0 %v156
    %207 = vmatmul.bf16.gmra.mxu0 %v77
    %v208 = vpop.f32.mrf.mxu0
    %v209 = vadd.f32 %v190, %v208
    %v210 = vpop.f32.mrf.mxu0
    %v211 = vadd.f32 %v192, %v210
    %212 = vmatmul.bf16.gmra.mxu0 %v79
    %v213 = vpop.f32.mrf.mxu0
    %v214 = vadd.f32 %v195, %v213
    %v215 = vpop.f32.mrf.mxu0
    %v216 = vadd.f32 %v197, %v215
    %217 = vdwg.mxu0
    %v218 = vpack.c.bf16 %v209, %v209
    %v219 = vpack.c.bf16 %v211, %v211
    %v220 = vpack.c.bf16 %v214, %v214
    %v221 = vpack.c.bf16 %v216, %v216
    %222 = vst [vmem:[#allocation2] sm:$0xf] %v218
    %223 = vst [vmem:[#allocation2 + $0x4] sm:$0xf] %v219
    %224 = vst [vmem:[#allocation2 + $0x8] sm:$0xf] %v220
    %225 = vst [vmem:[#allocation2 + $0xc] sm:$0xf] %v221
    %v226 = vld [vmem:[%s3] sm:$0xf]
    %v227 = vld [vmem:[%s3 + $0x4] sm:$0xf]
    %v228 = vld [vmem:[%s3 + $0x8] sm:$0xf]
    %v229 = vld [vmem:[%s3 + $0xc] sm:$0xf]
    %v230 = vld [vmem:[%s3 + $0x10] sm:$0xf]
    %v231 = vld [vmem:[%s3 + $0x14] sm:$0xf]
    %v232 = vld [vmem:[%s3 + $0x18] sm:$0xf]
    %v233 = vld [vmem:[%s3 + $0x1c] sm:$0xf]
    %v234 = vld [vmem:[%s3 + $0x20] sm:$0xf]
    %v235 = vld [vmem:[%s3 + $0x24] sm:$0xf]
    %v236 = vld [vmem:[%s3 + $0x28] sm:$0xf]
    %v237 = vld [vmem:[%s3 + $0x2c] sm:$0xf]
    %v238 = vld [vmem:[%s3 + $0x30] sm:$0xf]
    %v239 = vld [vmem:[%s3 + $0x34] sm:$0xf]
    %v240 = vld [vmem:[%s3 + $0x38] sm:$0xf]
    %v241 = vld [vmem:[%s3 + $0x3c] sm:$0xf]
    %v242 = vld [vmem:[%s4] sm:$0x1]
    %v244 = vperm.slane %v242, 0
    %v250 = vunpack.c.l.b16 %v218
    %v251 = vunpack.c.l.b16 %v219
    %v252 = vunpack.c.l.b16 %v220
    %v253 = vunpack.c.l.b16 %v221
    %v254 = vpack.c.b16 %v251, %v250
    %v255 = vpack.c.b16 %v253, %v252
    %v274 = vunpack.c.l.b16 %v226
    %v275 = vunpack.c.l.b16 %v227
    %v276 = vunpack.c.l.b16 %v228
    %v277 = vunpack.c.l.b16 %v229
    %v278 = vunpack.c.l.b16 %v230
    %v279 = vunpack.c.l.b16 %v231
    %v280 = vunpack.c.l.b16 %v232
    %v281 = vunpack.c.l.b16 %v233
    %v282 = vunpack.c.l.b16 %v234
    %v283 = vunpack.c.l.b16 %v235
    %v284 = vunpack.c.l.b16 %v236
    %v285 = vunpack.c.l.b16 %v237
    %v286 = vunpack.c.l.b16 %v238
    %v287 = vunpack.c.l.b16 %v239
    %v288 = vunpack.c.l.b16 %v240
    %v289 = vunpack.c.l.b16 %v241
    %v290 = vpack.c.b16 %v275, %v274
    %v291 = vpack.c.b16 %v277, %v276
    %v292 = vpack.c.b16 %v279, %v278
    %v293 = vpack.c.b16 %v281, %v280
    %v294 = vpack.c.b16 %v283, %v282
    %v295 = vpack.c.b16 %v285, %v284
    %v296 = vpack.c.b16 %v287, %v286
    %v297 = vpack.c.b16 %v289, %v288
    %306 = vmatpush.bf16.msra.mxu0 %v297
    %307 = vmatpush.bf16.msra.mxu0 %v296
    %308 = vmatpush.bf16.msra.mxu0 %v295
    %309 = vmatpush.bf16.msra.mxu0 %v294
    %310 = vmatpush.bf16.msra.mxu0 %v293
    %311 = vmatpush.bf16.msra.mxu0 %v292
    %312 = vmatpush.bf16.msra.mxu0 %v291
    %313 = vmatpush.bf16.msra.mxu0 %v290
    %314 = vmatmul.bf16.gmra.mxu0 %v254
    %v315 = vpop.f32.mrf.mxu0
    %v316 = vadd.f32 %v244, %v315
    %v317 = vpop.f32.mrf.mxu0
    %v318 = vadd.f32 %v244, %v317
    %319 = vmatmul.bf16.gmra.mxu0 %v255
    %v320 = vpop.f32.mrf.mxu0
    %v321 = vadd.f32 %v244, %v320
    %v322 = vpop.f32.mrf.mxu0
    %v323 = vadd.f32 %v244, %v322
    %324 = vdwg.mxu0
    %v325 = vxor.u32 %v316, 2147483648
    %v326 = vxor.u32 %v318, 2147483648
    %v327 = vxor.u32 %v321, 2147483648
    %v328 = vxor.u32 %v323, 2147483648
    %v329 = vmul.f32 %v325, 1.442695
    %v330 = vpow.pop %v329
    %v331 = vmul.f32 %v326, 1.442695
    %v332 = vpow.pop %v331
    %v333 = vmul.f32 %v327, 1.442695
    %v334 = vpow.pop %v333
    %v335 = vmul.f32 %v328, 1.442695
    %v336 = vpow.pop %v335
    %v337 = vadd.f32 %v330, 1.0
    %v338 = vadd.f32 %v332, 1.0
    %v339 = vadd.f32 %v334, 1.0
    %v340 = vadd.f32 %v336, 1.0
    %v341 = vrcp.pop %v337
    %v342 = vmul.f32 %v337, %v341
    %v343 = vsub.f32 1.0, %v342
    %v344 = vmul.f32 %v341, %v343
    %v345 = vadd.f32 %v341, %v344
    %vm346 = vweird.f32 %v337
    %vm347 = vweird.f32 %v341
    %vm348 = vmor %vm346, %vm347
    %v349 = vsel %vm348, %v341, %v345
    %v350 = vand.u32 2147483647, %v337
    %vm351 = vcmp.eq.f32.partialorder %v350, 8.507059e+37
    %v352 = vand.u32 %v337, 2147483648
    %v353 = vor.u32 1.1754944e-38, %v352
    %v354 = vsel %vm351, %v353, %v349
    %v355 = vmul.f32 1.0, %v354
    %v356 = vrcp.pop %v338
    %v357 = vmul.f32 %v338, %v356
    %v358 = vsub.f32 1.0, %v357
    %v359 = vmul.f32 %v356, %v358
    %v360 = vadd.f32 %v356, %v359
    %vm361 = vweird.f32 %v338
    %vm362 = vweird.f32 %v356
    %vm363 = vmor %vm361, %vm362
    %v364 = vsel %vm363, %v356, %v360
    %v365 = vand.u32 2147483647, %v338
    %vm366 = vcmp.eq.f32.partialorder %v365, 8.507059e+37
    %v367 = vand.u32 %v338, 2147483648
    %v368 = vor.u32 1.1754944e-38, %v367
    %v369 = vsel %vm366, %v368, %v364
    %v370 = vmul.f32 1.0, %v369
    %v371 = vrcp.pop %v339
    %v372 = vmul.f32 %v339, %v371
    %v373 = vsub.f32 1.0, %v372
    %v374 = vmul.f32 %v371, %v373
    %v375 = vadd.f32 %v371, %v374
    %vm376 = vweird.f32 %v339
    %vm377 = vweird.f32 %v371
    %vm378 = vmor %vm376, %vm377
    %v379 = vsel %vm378, %v371, %v375
    %v380 = vand.u32 2147483647, %v339
    %vm381 = vcmp.eq.f32.partialorder %v380, 8.507059e+37
    %v382 = vand.u32 %v339, 2147483648
    %v383 = vor.u32 1.1754944e-38, %v382
    %v384 = vsel %vm381, %v383, %v379
    %v385 = vmul.f32 1.0, %v384
    %v386 = vrcp.pop %v340
    %v387 = vmul.f32 %v340, %v386
    %v388 = vsub.f32 1.0, %v387
    %v389 = vmul.f32 %v386, %v388
    %v390 = vadd.f32 %v386, %v389
    %vm391 = vweird.f32 %v340
    %vm392 = vweird.f32 %v386
    %vm393 = vmor %vm391, %vm392
    %v394 = vsel %vm393, %v386, %v390
    %v395 = vand.u32 2147483647, %v340
    %vm396 = vcmp.eq.f32.partialorder %v395, 8.507059e+37
    %v397 = vand.u32 %v340, 2147483648
    %v398 = vor.u32 1.1754944e-38, %v397
    %v399 = vsel %vm396, %v398, %v394
    %v400 = vmul.f32 1.0, %v399
    %401 = vst [vmem:[#allocation4] sm:$0xff] %v355
    %402 = vst [vmem:[#allocation4 + $0x8] sm:$0xff] %v370
    %403 = vst [vmem:[#allocation4 + $0x10] sm:$0xff] %v385
    %404 = vst [vmem:[#allocation4 + $0x18] sm:$0xff] %v400
    // Predicated region
    $region22: #{gsnet_forward.7} parent=1 // pred_check
      _
    $region23: #{gsnet_forward.7} parent=1 // pred_check_branch
      %406 = sbr.rel (0) target = $region25
    $region24: #{gsnet_forward.7} parent=1 // pred_region
      %408 = vsyncadd [#allocation3], 0
      %s409 = sshll.u32 [#allocation2], 4
      %s410 = int_to_ptr.vmem [resolvable:$true] %s409
      %s411 = sshll.u32 %s5, 4
      %s412 = int_to_ptr.hbm [resolvable:$true] %s411
      %417 = dma.vmem_to_hbm [thread:$0]  %s410, 256, %s412, [#allocation3], 64, 64, 4
    $region25: #{gsnet_forward.7} parent=1 // pred_fallthru
      _
    // Predicated region
    $region26: #{gsnet_forward.7} parent=1 // pred_check
      _
    $region27: #{gsnet_forward.7} parent=1 // pred_check_branch
      %419 = sbr.rel (0) target = $region29
    $region28: #{gsnet_forward.7} parent=1 // pred_region
      %421 = vsyncadd [#allocation5], 0
      %s422 = sshll.u32 [#allocation4], 4
      %s423 = int_to_ptr.vmem [resolvable:$true] %s422
      %s424 = sshll.u32 %s6, 4
      %s425 = int_to_ptr.hbm [resolvable:$true] %s424
      %430 = dma.vmem_to_hbm [thread:$0]  %s423, 512, %s425, [#allocation5], 128, 128, 8
    $region29: #{gsnet_forward.7} parent=1 // pred_fallthru
      _
    // Predicated region
    $region30: #{gsnet_forward.7} parent=1 // pred_check
      _
    $region31: #{gsnet_forward.7} parent=1 // pred_check_branch
      %432 = sbr.rel (0) target = $region33
    $region32: #{gsnet_forward.7} parent=1 // pred_region
      %434 = dma.done [#allocation3], 256
    $region33: #{gsnet_forward.7} parent=1 // pred_fallthru
      _
    // Predicated region
    $region34: #{gsnet_forward.7} parent=1 // pred_check
      _
    $region35: #{gsnet_forward.7} parent=1 // pred_check_branch
      %436 = sbr.rel (0) target = $region37
    $region36: #{gsnet_forward.7} parent=1 // pred_region
      %438 = dma.done [#allocation5], 512
    $region37: #{gsnet_forward.7} parent=1 // pred_fallthru
      _
    %439 = vsyncpa [#allocation3], 1
    %440 = vsyncpa [#allocation5], 1

// kernel: gsnet_forward.11
$region0: #{gsnet_forward.11}
  #allocation0 [shape = 'u32[]', space=smem, size = 0x4, offset = 0x4, fixed_abs, tag = 'smem constant byte address 0x4 - core index']
  #allocation1 [shape = 'u32[72,128]{1,0:T(1,128)}', space=vmem, size = 0x9000, scoped, tag = 'internal scratch']
  %s0 = inlined_call_operand.vmem [shape: bf16[128,64], index: 0, kind: input, shape index: {}]
  %s1 = inlined_call_operand.vmem [shape: bf16[64,256], index: 1, kind: input, shape index: {}]
  %s2 = inlined_call_operand.vmem [shape: f32[1,256], index: 2, kind: input, shape index: {}]
  %s3 = inlined_call_operand.vmem [shape: bf16[128,256], index: 3, kind: output, shape index: {}]
  %s4 = sld [smem:[#allocation0]]
  $region22: #{gsnet_forward.11} parent=0
    _
  %s6 = ssub.s32 1, %s4
  %s7 = scalar_select 0, %s6, %s4
  // Predicated region
  $region2: #{gsnet_forward.11} parent=0 // pred_check
    _
  $region3: #{gsnet_forward.11} parent=0 // pred_check_branch
    %9 = sbr.rel (0) target = $region5
  $region4: #{gsnet_forward.11} parent=0 // pred_region
    _
  $region5: #{gsnet_forward.11} parent=0 // pred_fallthru
    _
  // Predicated region
  $region6: #{gsnet_forward.11} parent=0 // pred_check
    _
  $region7: #{gsnet_forward.11} parent=0 // pred_check_branch
    %11 = sbr.rel (0) target = $region9
  $region8: #{gsnet_forward.11} parent=0 // pred_region
    _
  $region9: #{gsnet_forward.11} parent=0 // pred_fallthru
    _
  // Predicated region
  $region10: #{gsnet_forward.11} parent=0 // pred_check
    _
  $region11: #{gsnet_forward.11} parent=0 // pred_check_branch
    %13 = sbr.rel (0) target = $region13
  $region12: #{gsnet_forward.11} parent=0 // pred_region
    _
  $region13: #{gsnet_forward.11} parent=0 // pred_fallthru
    _
  %v15 = vld [vmem:[%s0] sm:$0xf]
  %v16 = vld [vmem:[%s0 + $0x4] sm:$0xf]
  %v17 = vld [vmem:[%s0 + $0x8] sm:$0xf]
  %v18 = vld [vmem:[%s0 + $0xc] sm:$0xf]
  %v19 = vld [vmem:[%s0 + $0x10] sm:$0xf]
  %v20 = vld [vmem:[%s0 + $0x14] sm:$0xf]
  %v21 = vld [vmem:[%s0 + $0x18] sm:$0xf]
  %v22 = vld [vmem:[%s0 + $0x1c] sm:$0xf]
  %v23 = vld [vmem:[%s0 + $0x20] sm:$0xf]
  %v24 = vld [vmem:[%s0 + $0x24] sm:$0xf]
  %v25 = vld [vmem:[%s0 + $0x28] sm:$0xf]
  %v26 = vld [vmem:[%s0 + $0x2c] sm:$0xf]
  %v27 = vld [vmem:[%s0 + $0x30] sm:$0xf]
  %v28 = vld [vmem:[%s0 + $0x34] sm:$0xf]
  %v29 = vld [vmem:[%s0 + $0x38] sm:$0xf]
  %v30 = vld [vmem:[%s0 + $0x3c] sm:$0xf]
  %v31 = vld [vmem:[%s1] sm:$0xff]
  %v32 = vld [vmem:[%s1 + $0x8] sm:$0xff]
  %v33 = vld [vmem:[%s1 + $0x10] sm:$0xff]
  %v34 = vld [vmem:[%s1 + $0x18] sm:$0xff]
  %v35 = vld [vmem:[%s1 + $0x20] sm:$0xff]
  %v36 = vld [vmem:[%s1 + $0x28] sm:$0xff]
  %v37 = vld [vmem:[%s1 + $0x30] sm:$0xff]
  %v38 = vld [vmem:[%s1 + $0x38] sm:$0xff]
  %v39 = vld [vmem:[%s2] sm:$0x3]
  %v41 = vperm.slane %v39, 0
  %v42 = vperm.slane %v39, 1
  %v61 = vunpack.c.l.b16 %v15
  %v62 = vunpack.c.l.b16 %v16
  %v63 = vunpack.c.l.b16 %v17
  %v64 = vunpack.c.l.b16 %v18
  %v65 = vunpack.c.l.b16 %v19
  %v66 = vunpack.c.l.b16 %v20
  %v67 = vunpack.c.l.b16 %v21
  %v68 = vunpack.c.l.b16 %v22
  %v69 = vunpack.c.l.b16 %v23
  %v70 = vunpack.c.l.b16 %v24
  %v71 = vunpack.c.l.b16 %v25
  %v72 = vunpack.c.l.b16 %v26
  %v73 = vunpack.c.l.b16 %v27
  %v74 = vunpack.c.l.b16 %v28
  %v75 = vunpack.c.l.b16 %v29
  %v76 = vunpack.c.l.b16 %v30
  %v77 = vpack.c.b16 %v62, %v61
  %v78 = vpack.c.b16 %v64, %v63
  %v79 = vpack.c.b16 %v66, %v65
  %v80 = vpack.c.b16 %v68, %v67
  %v81 = vpack.c.b16 %v70, %v69
  %v82 = vpack.c.b16 %v72, %v71
  %v83 = vpack.c.b16 %v74, %v73
  %v84 = vpack.c.b16 %v76, %v75
  %v93 = vunpack.c.l.b16 %v31
  %v94 = vunpack.c.h.b16 %v31
  %v95 = vunpack.c.l.b16 %v32
  %v96 = vunpack.c.h.b16 %v32
  %v97 = vunpack.c.l.b16 %v33
  %v98 = vunpack.c.h.b16 %v33
  %v99 = vunpack.c.l.b16 %v34
  %v100 = vunpack.c.h.b16 %v34
  %v101 = vunpack.c.l.b16 %v35
  %v102 = vunpack.c.h.b16 %v35
  %v103 = vunpack.c.l.b16 %v36
  %v104 = vunpack.c.h.b16 %v36
  %v105 = vunpack.c.l.b16 %v37
  %v106 = vunpack.c.h.b16 %v37
  %v107 = vunpack.c.l.b16 %v38
  %v108 = vunpack.c.h.b16 %v38
  %v109 = vpack.c.b16 %v95, %v93
  %v110 = vpack.c.b16 %v96, %v94
  %v111 = vpack.c.b16 %v99, %v97
  %v112 = vpack.c.b16 %v100, %v98
  %v113 = vpack.c.b16 %v103, %v101
  %v114 = vpack.c.b16 %v104, %v102
  %v115 = vpack.c.b16 %v107, %v105
  %v116 = vpack.c.b16 %v108, %v106
  %vm125 = vcmask 523264
  %v127 = vsel %vm125, %v77, 0
  %v130 = vsel %vm125, %v78, 0
  %v133 = vsel %vm125, %v79, 0
  %v136 = vsel %vm125, %v80, 0
  %v139 = vsel %vm125, %v81, 0
  %v142 = vsel %vm125, %v82, 0
  %v145 = vsel %vm125, %v83, 0
  %v148 = vsel %vm125, %v84, 0
  %150 = vmatpush.bf16.msra.mxu0 0
  %151 = vmatpush.bf16.msra.mxu0 0
  %152 = vmatpush.bf16.msra.mxu0 0
  %153 = vmatpush.bf16.msra.mxu0 0
  %154 = vmatpush.bf16.msra.mxu0 %v115
  %155 = vmatpush.bf16.msra.mxu0 %v113
  %156 = vmatpush.bf16.msra.mxu0 %v111
  %157 = vmatpush.bf16.msra.mxu0 %v109
  %158 = vmatmul.bf16.gmra.mxu0 %v127
  %v159 = vpop.f32.mrf.mxu0
  %v160 = vadd.f32 %v41, %v159
  %v161 = vpop.f32.mrf.mxu0
  %v162 = vadd.f32 %v41, %v161
  %163 = vmatmul.bf16.gmra.mxu0 %v130
  %v164 = vpop.f32.mrf.mxu0
  %v165 = vadd.f32 %v41, %v164
  %v166 = vpop.f32.mrf.mxu0
  %v167 = vadd.f32 %v41, %v166
  %168 = vmatmul.bf16.gmra.mxu0 %v133
  %v169 = vpop.f32.mrf.mxu0
  %v170 = vadd.f32 %v41, %v169
  %v171 = vpop.f32.mrf.mxu0
  %v172 = vadd.f32 %v41, %v171
  %173 = vmatmul.bf16.gmra.mxu0 %v136
  %v174 = vpop.f32.mrf.mxu0
  %v175 = vadd.f32 %v41, %v174
  %v176 = vpop.f32.mrf.mxu0
  %v177 = vadd.f32 %v41, %v176
  %178 = vmatmul.bf16.gmra.mxu0 %v139
  %v179 = vpop.f32.mrf.mxu0
  %v180 = vadd.f32 %v41, %v179
  %v181 = vpop.f32.mrf.mxu0
  %v182 = vadd.f32 %v41, %v181
  %183 = vmatmul.bf16.gmra.mxu0 %v142
  %v184 = vpop.f32.mrf.mxu0
  %v185 = vadd.f32 %v41, %v184
  %v186 = vpop.f32.mrf.mxu0
  %v187 = vadd.f32 %v41, %v186
  %188 = vmatmul.bf16.gmra.mxu0 %v145
  %v189 = vpop.f32.mrf.mxu0
  %v190 = vadd.f32 %v41, %v189
  %v191 = vpop.f32.mrf.mxu0
  %v192 = vadd.f32 %v41, %v191
  %193 = vmatmul.bf16.gmra.mxu0 %v148
  %v194 = vpop.f32.mrf.mxu0
  %v195 = vadd.f32 %v41, %v194
  %v196 = vpop.f32.mrf.mxu0
  %v197 = vadd.f32 %v41, %v196
  %198 = vdwg.mxu0
  %199 = vmatpush.bf16.msra.mxu0 0
  %200 = vmatpush.bf16.msra.mxu0 0
  %201 = vmatpush.bf16.msra.mxu0 0
  %202 = vmatpush.bf16.msra.mxu0 0
  %203 = vmatpush.bf16.msra.mxu0 %v116
  %204 = vmatpush.bf16.msra.mxu0 %v114
  %205 = vmatpush.bf16.msra.mxu0 %v112
  %206 = vmatpush.bf16.msra.mxu0 %v110
  %207 = vmatmul.bf16.gmra.mxu0 %v127
  %v208 = vpop.f32.mrf.mxu0
  %v209 = vadd.f32 %v42, %v208
  %v210 = vpop.f32.mrf.mxu0
  %v211 = vadd.f32 %v42, %v210
  %212 = vmatmul.bf16.gmra.mxu0 %v130
  %v213 = vpop.f32.mrf.mxu0
  %v214 = vadd.f32 %v42, %v213
  %v215 = vpop.f32.mrf.mxu0
  %v216 = vadd.f32 %v42, %v215
  %217 = vmatmul.bf16.gmra.mxu0 %v133
  %v218 = vpop.f32.mrf.mxu0
  %v219 = vadd.f32 %v42, %v218
  %v220 = vpop.f32.mrf.mxu0
  %v221 = vadd.f32 %v42, %v220
  %222 = vmatmul.bf16.gmra.mxu0 %v136
  %v223 = vpop.f32.mrf.mxu0
  %v224 = vadd.f32 %v42, %v223
  %v225 = vpop.f32.mrf.mxu0
  %v226 = vadd.f32 %v42, %v225
  %227 = vmatmul.bf16.gmra.mxu0 %v139
  %v228 = vpop.f32.mrf.mxu0
  %v229 = vadd.f32 %v42, %v228
  %v230 = vpop.f32.mrf.mxu0
  %v231 = vadd.f32 %v42, %v230
  %232 = vmatmul.bf16.gmra.mxu0 %v142
  %v233 = vpop.f32.mrf.mxu0
  %v234 = vadd.f32 %v42, %v233
  %v235 = vpop.f32.mrf.mxu0
  %v236 = vadd.f32 %v42, %v235
  %237 = vmatmul.bf16.gmra.mxu0 %v145
  %v238 = vpop.f32.mrf.mxu0
  %v239 = vadd.f32 %v42, %v238
  %v240 = vpop.f32.mrf.mxu0
  %v241 = vadd.f32 %v42, %v240
  %242 = vmatmul.bf16.gmra.mxu0 %v148
  %v243 = vpop.f32.mrf.mxu0
  %v244 = vadd.f32 %v42, %v243
  %v245 = vpop.f32.mrf.mxu0
  %v246 = vadd.f32 %v42, %v245
  %247 = vdwg.mxu0
  %v248 = vpack.c.bf16 %v209, %v160
  %v249 = vpack.c.bf16 %v211, %v162
  %v250 = vpack.c.bf16 %v214, %v165
  %v251 = vpack.c.bf16 %v216, %v167
  %v252 = vpack.c.bf16 %v219, %v170
  %v253 = vpack.c.bf16 %v221, %v172
  %v254 = vpack.c.bf16 %v224, %v175
  %v255 = vpack.c.bf16 %v226, %v177
  %v256 = vpack.c.bf16 %v229, %v180
  %v257 = vpack.c.bf16 %v231, %v182
  %v258 = vpack.c.bf16 %v234, %v185
  %v259 = vpack.c.bf16 %v236, %v187
  %v260 = vpack.c.bf16 %v239, %v190
  %v261 = vpack.c.bf16 %v241, %v192
  %v262 = vpack.c.bf16 %v244, %v195
  %v263 = vpack.c.bf16 %v246, %v197
  %264 = vst [vmem:[%s3] sm:$0xff] %v248
  %265 = vst [vmem:[%s3 + $0x8] sm:$0xff] %v249
  %266 = vst [vmem:[%s3 + $0x10] sm:$0xff] %v250
  %267 = vst [vmem:[%s3 + $0x18] sm:$0xff] %v251
  %268 = vst [vmem:[%s3 + $0x20] sm:$0xff] %v252
  %269 = vst [vmem:[%s3 + $0x28] sm:$0xff] %v253
  %270 = vst [vmem:[%s3 + $0x30] sm:$0xff] %v254
  %271 = vst [vmem:[%s3 + $0x38] sm:$0xff] %v255
  %272 = vst [vmem:[%s3 + $0x40] sm:$0xff] %v256
  %273 = vst [vmem:[%s3 + $0x48] sm:$0xff] %v257
  %274 = vst [vmem:[%s3 + $0x50] sm:$0xff] %v258
  %275 = vst [vmem:[%s3 + $0x58] sm:$0xff] %v259
  %276 = vst [vmem:[%s3 + $0x60] sm:$0xff] %v260
  %277 = vst [vmem:[%s3 + $0x68] sm:$0xff] %v261
  %278 = vst [vmem:[%s3 + $0x70] sm:$0xff] %v262
  %279 = vst [vmem:[%s3 + $0x78] sm:$0xff] %v263
  // Predicated region
  $region14: #{gsnet_forward.11} parent=0 // pred_check
    _
  $region15: #{gsnet_forward.11} parent=0 // pred_check_branch
    %281 = sbr.rel (0) target = $region17
  $region16: #{gsnet_forward.11} parent=0 // pred_region
    _
  $region17: #{gsnet_forward.11} parent=0 // pred_fallthru
    _
  // Predicated region
  $region18: #{gsnet_forward.11} parent=0 // pred_check
    _
  $region19: #{gsnet_forward.11} parent=0 // pred_check_branch
    %283 = sbr.rel (0) target = $region21
  $region20: #{gsnet_forward.11} parent=0 // pred_region
    _
  $region21: #{gsnet_forward.11} parent=0 // pred_fallthru
    _

// kernel: gsnet_forward.10
$region0: #{gsnet_forward.10}
  #allocation0 [shape = 'u32[]', space=smem, size = 0x4, offset = 0x4, fixed_abs, tag = 'smem constant byte address 0x4 - core index']
  #allocation1 [shape = 'u32[72,128]{1,0:T(1,128)}', space=vmem, size = 0x9000, scoped, tag = 'internal scratch']
  %s0 = inlined_call_operand.vmem [shape: bf16[128,64], index: 0, kind: input, shape index: {}]
  %s1 = inlined_call_operand.vmem [shape: bf16[64,128], index: 1, kind: input, shape index: {}]
  %s2 = inlined_call_operand.vmem [shape: f32[1,128], index: 2, kind: input, shape index: {}]
  %s3 = inlined_call_operand.vmem [shape: bf16[128,128], index: 3, kind: output, shape index: {}]
  %s4 = sld [smem:[#allocation0]]
  $region22: #{gsnet_forward.10} parent=0
    _
  %s6 = ssub.s32 1, %s4
  %s7 = scalar_select 0, %s6, %s4
  // Predicated region
  $region2: #{gsnet_forward.10} parent=0 // pred_check
    _
  $region3: #{gsnet_forward.10} parent=0 // pred_check_branch
    %9 = sbr.rel (0) target = $region5
  $region4: #{gsnet_forward.10} parent=0 // pred_region
    _
  $region5: #{gsnet_forward.10} parent=0 // pred_fallthru
    _
  // Predicated region
  $region6: #{gsnet_forward.10} parent=0 // pred_check
    _
  $region7: #{gsnet_forward.10} parent=0 // pred_check_branch
    %11 = sbr.rel (0) target = $region9
  $region8: #{gsnet_forward.10} parent=0 // pred_region
    _
  $region9: #{gsnet_forward.10} parent=0 // pred_fallthru
    _
  // Predicated region
  $region10: #{gsnet_forward.10} parent=0 // pred_check
    _
  $region11: #{gsnet_forward.10} parent=0 // pred_check_branch
    %13 = sbr.rel (0) target = $region13
  $region12: #{gsnet_forward.10} parent=0 // pred_region
    _
  $region13: #{gsnet_forward.10} parent=0 // pred_fallthru
    _
  %v15 = vld [vmem:[%s0] sm:$0xf]
  %v16 = vld [vmem:[%s0 + $0x4] sm:$0xf]
  %v17 = vld [vmem:[%s0 + $0x8] sm:$0xf]
  %v18 = vld [vmem:[%s0 + $0xc] sm:$0xf]
  %v19 = vld [vmem:[%s0 + $0x10] sm:$0xf]
  %v20 = vld [vmem:[%s0 + $0x14] sm:$0xf]
  %v21 = vld [vmem:[%s0 + $0x18] sm:$0xf]
  %v22 = vld [vmem:[%s0 + $0x1c] sm:$0xf]
  %v23 = vld [vmem:[%s0 + $0x20] sm:$0xf]
  %v24 = vld [vmem:[%s0 + $0x24] sm:$0xf]
  %v25 = vld [vmem:[%s0 + $0x28] sm:$0xf]
  %v26 = vld [vmem:[%s0 + $0x2c] sm:$0xf]
  %v27 = vld [vmem:[%s0 + $0x30] sm:$0xf]
  %v28 = vld [vmem:[%s0 + $0x34] sm:$0xf]
  %v29 = vld [vmem:[%s0 + $0x38] sm:$0xf]
  %v30 = vld [vmem:[%s0 + $0x3c] sm:$0xf]
  %v31 = vld [vmem:[%s1] sm:$0xf]
  %v32 = vld [vmem:[%s1 + $0x4] sm:$0xf]
  %v33 = vld [vmem:[%s1 + $0x8] sm:$0xf]
  %v34 = vld [vmem:[%s1 + $0xc] sm:$0xf]
  %v35 = vld [vmem:[%s1 + $0x10] sm:$0xf]
  %v36 = vld [vmem:[%s1 + $0x14] sm:$0xf]
  %v37 = vld [vmem:[%s1 + $0x18] sm:$0xf]
  %v38 = vld [vmem:[%s1 + $0x1c] sm:$0xf]
  %v39 = vld [vmem:[%s2] sm:$0x1]
  %v41 = vperm.slane %v39, 0
  %v59 = vunpack.c.l.b16 %v15
  %v60 = vunpack.c.l.b16 %v16
  %v61 = vunpack.c.l.b16 %v17
  %v62 = vunpack.c.l.b16 %v18
  %v63 = vunpack.c.l.b16 %v19
  %v64 = vunpack.c.l.b16 %v20
  %v65 = vunpack.c.l.b16 %v21
  %v66 = vunpack.c.l.b16 %v22
  %v67 = vunpack.c.l.b16 %v23
  %v68 = vunpack.c.l.b16 %v24
  %v69 = vunpack.c.l.b16 %v25
  %v70 = vunpack.c.l.b16 %v26
  %v71 = vunpack.c.l.b16 %v27
  %v72 = vunpack.c.l.b16 %v28
  %v73 = vunpack.c.l.b16 %v29
  %v74 = vunpack.c.l.b16 %v30
  %v75 = vpack.c.b16 %v60, %v59
  %v76 = vpack.c.b16 %v62, %v61
  %v77 = vpack.c.b16 %v64, %v63
  %v78 = vpack.c.b16 %v66, %v65
  %v79 = vpack.c.b16 %v68, %v67
  %v80 = vpack.c.b16 %v70, %v69
  %v81 = vpack.c.b16 %v72, %v71
  %v82 = vpack.c.b16 %v74, %v73
  %v91 = vunpack.c.l.b16 %v31
  %v92 = vunpack.c.l.b16 %v32
  %v93 = vunpack.c.l.b16 %v33
  %v94 = vunpack.c.l.b16 %v34
  %v95 = vunpack.c.l.b16 %v35
  %v96 = vunpack.c.l.b16 %v36
  %v97 = vunpack.c.l.b16 %v37
  %v98 = vunpack.c.l.b16 %v38
  %v99 = vpack.c.b16 %v92, %v91
  %v100 = vpack.c.b16 %v94, %v93
  %v101 = vpack.c.b16 %v96, %v95
  %v102 = vpack.c.b16 %v98, %v97
  %vm107 = vcmask 523264
  %v109 = vsel %vm107, %v75, 0
  %v112 = vsel %vm107, %v76, 0
  %v115 = vsel %vm107, %v77, 0
  %v118 = vsel %vm107, %v78, 0
  %v121 = vsel %vm107, %v79, 0
  %v124 = vsel %vm107, %v80, 0
  %v127 = vsel %vm107, %v81, 0
  %v130 = vsel %vm107, %v82, 0
  %132 = vmatpush.bf16.msra.mxu0 0
  %133 = vmatpush.bf16.msra.mxu0 0
  %134 = vmatpush.bf16.msra.mxu0 0
  %135 = vmatpush.bf16.msra.mxu0 0
  %136 = vmatpush.bf16.msra.mxu0 %v102
  %137 = vmatpush.bf16.msra.mxu0 %v101
  %138 = vmatpush.bf16.msra.mxu0 %v100
  %139 = vmatpush.bf16.msra.mxu0 %v99
  %140 = vmatmul.bf16.gmra.mxu0 %v109
  %v141 = vpop.f32.mrf.mxu0
  %v142 = vadd.f32 %v41, %v141
  %v143 = vpop.f32.mrf.mxu0
  %v144 = vadd.f32 %v41, %v143
  %145 = vmatmul.bf16.gmra.mxu0 %v112
  %v146 = vpop.f32.mrf.mxu0
  %v147 = vadd.f32 %v41, %v146
  %v148 = vpop.f32.mrf.mxu0
  %v149 = vadd.f32 %v41, %v148
  %150 = vmatmul.bf16.gmra.mxu0 %v115
  %v151 = vpop.f32.mrf.mxu0
  %v152 = vadd.f32 %v41, %v151
  %v153 = vpop.f32.mrf.mxu0
  %v154 = vadd.f32 %v41, %v153
  %155 = vmatmul.bf16.gmra.mxu0 %v118
  %v156 = vpop.f32.mrf.mxu0
  %v157 = vadd.f32 %v41, %v156
  %v158 = vpop.f32.mrf.mxu0
  %v159 = vadd.f32 %v41, %v158
  %160 = vmatmul.bf16.gmra.mxu0 %v121
  %v161 = vpop.f32.mrf.mxu0
  %v162 = vadd.f32 %v41, %v161
  %v163 = vpop.f32.mrf.mxu0
  %v164 = vadd.f32 %v41, %v163
  %165 = vmatmul.bf16.gmra.mxu0 %v124
  %v166 = vpop.f32.mrf.mxu0
  %v167 = vadd.f32 %v41, %v166
  %v168 = vpop.f32.mrf.mxu0
  %v169 = vadd.f32 %v41, %v168
  %170 = vmatmul.bf16.gmra.mxu0 %v127
  %v171 = vpop.f32.mrf.mxu0
  %v172 = vadd.f32 %v41, %v171
  %v173 = vpop.f32.mrf.mxu0
  %v174 = vadd.f32 %v41, %v173
  %175 = vmatmul.bf16.gmra.mxu0 %v130
  %v176 = vpop.f32.mrf.mxu0
  %v177 = vadd.f32 %v41, %v176
  %v178 = vpop.f32.mrf.mxu0
  %v179 = vadd.f32 %v41, %v178
  %180 = vdwg.mxu0
  %v181 = vpack.c.bf16 %v142, %v142
  %v182 = vpack.c.bf16 %v144, %v144
  %v183 = vpack.c.bf16 %v147, %v147
  %v184 = vpack.c.bf16 %v149, %v149
  %v185 = vpack.c.bf16 %v152, %v152
  %v186 = vpack.c.bf16 %v154, %v154
  %v187 = vpack.c.bf16 %v157, %v157
  %v188 = vpack.c.bf16 %v159, %v159
  %v189 = vpack.c.bf16 %v162, %v162
  %v190 = vpack.c.bf16 %v164, %v164
  %v191 = vpack.c.bf16 %v167, %v167
  %v192 = vpack.c.bf16 %v169, %v169
  %v193 = vpack.c.bf16 %v172, %v172
  %v194 = vpack.c.bf16 %v174, %v174
  %v195 = vpack.c.bf16 %v177, %v177
  %v196 = vpack.c.bf16 %v179, %v179
  %197 = vst [vmem:[%s3] sm:$0xf] %v181
  %198 = vst [vmem:[%s3 + $0x4] sm:$0xf] %v182
  %199 = vst [vmem:[%s3 + $0x8] sm:$0xf] %v183
  %200 = vst [vmem:[%s3 + $0xc] sm:$0xf] %v184
  %201 = vst [vmem:[%s3 + $0x10] sm:$0xf] %v185
  %202 = vst [vmem:[%s3 + $0x14] sm:$0xf] %v186
  %203 = vst [vmem:[%s3 + $0x18] sm:$0xf] %v187
  %204 = vst [vmem:[%s3 + $0x1c] sm:$0xf] %v188
  %205 = vst [vmem:[%s3 + $0x20] sm:$0xf] %v189
  %206 = vst [vmem:[%s3 + $0x24] sm:$0xf] %v190
  %207 = vst [vmem:[%s3 + $0x28] sm:$0xf] %v191
  %208 = vst [vmem:[%s3 + $0x2c] sm:$0xf] %v192
  %209 = vst [vmem:[%s3 + $0x30] sm:$0xf] %v193
  %210 = vst [vmem:[%s3 + $0x34] sm:$0xf] %v194
  %211 = vst [vmem:[%s3 + $0x38] sm:$0xf] %v195
  %212 = vst [vmem:[%s3 + $0x3c] sm:$0xf] %v196
  // Predicated region
  $region14: #{gsnet_forward.10} parent=0 // pred_check
    _
  $region15: #{gsnet_forward.10} parent=0 // pred_check_branch
    %214 = sbr.rel (0) target = $region17
  $region16: #{gsnet_forward.10} parent=0 // pred_region
    _
  $region17: #{gsnet_forward.10} parent=0 // pred_fallthru
    _
  // Predicated region
  $region18: #{gsnet_forward.10} parent=0 // pred_check
    _
  $region19: #{gsnet_forward.10} parent=0 // pred_check_branch
    %216 = sbr.rel (0) target = $region21
  $region20: #{gsnet_forward.10} parent=0 // pred_region
    _
  $region21: #{gsnet_forward.10} parent=0 // pred_fallthru
    _

// kernel: gsnet_forward.8
$region0: #{gsnet_forward.8}
  #allocation0 [shape = 'u32[]', space=smem, size = 0x4, offset = 0x4, fixed_abs, tag = 'smem constant byte address 0x4 - core index']
  #allocation1 [shape = 'u32[72,128]{1,0:T(1,128)}', space=vmem, size = 0x9000, scoped, tag = 'internal scratch']
  %s0 = inlined_call_operand.vmem [shape: bf16[128,64], index: 0, kind: input, shape index: {}]
  %s1 = inlined_call_operand.vmem [shape: bf16[64,128], index: 1, kind: input, shape index: {}]
  %s2 = inlined_call_operand.vmem [shape: f32[1,128], index: 2, kind: input, shape index: {}]
  %s3 = inlined_call_operand.hbm [shape: bf16[128,128], index: 3, kind: output, shape index: {}]
  %s4 = sld [smem:[#allocation0]]
  $region22: #{gsnet_forward.8} parent=0
    _
  %s6 = ssub.s32 1, %s4
  %s7 = scalar_select 0, %s6, %s4
  $region1: #{gsnet_forward.8} parent=0
    #allocation2 [shape = 'u8[32768]{0}', space=vmem, size = 0x8000, scoped, tag = 'output window, operand 0, single buffered']
    #allocation3 [shape = 's32[1]{0}', space=sflag, size = 0x4, scoped, tag = 'scoped memory for gsnet_forward.8']
    %8 = vsyncpa [#allocation3], 0
    // Predicated region
    $region2: #{gsnet_forward.8} parent=1 // pred_check
      _
    $region3: #{gsnet_forward.8} parent=1 // pred_check_branch
      %10 = sbr.rel (0) target = $region5
    $region4: #{gsnet_forward.8} parent=1 // pred_region
      _
    $region5: #{gsnet_forward.8} parent=1 // pred_fallthru
      _
    // Predicated region
    $region6: #{gsnet_forward.8} parent=1 // pred_check
      _
    $region7: #{gsnet_forward.8} parent=1 // pred_check_branch
      %12 = sbr.rel (0) target = $region9
    $region8: #{gsnet_forward.8} parent=1 // pred_region
      _
    $region9: #{gsnet_forward.8} parent=1 // pred_fallthru
      _
    // Predicated region
    $region10: #{gsnet_forward.8} parent=1 // pred_check
      _
    $region11: #{gsnet_forward.8} parent=1 // pred_check_branch
      %14 = sbr.rel (0) target = $region13
    $region12: #{gsnet_forward.8} parent=1 // pred_region
      _
    $region13: #{gsnet_forward.8} parent=1 // pred_fallthru
      _
    %v16 = vld [vmem:[%s0] sm:$0xf]
    %v17 = vld [vmem:[%s0 + $0x4] sm:$0xf]
    %v18 = vld [vmem:[%s0 + $0x8] sm:$0xf]
    %v19 = vld [vmem:[%s0 + $0xc] sm:$0xf]
    %v20 = vld [vmem:[%s0 + $0x10] sm:$0xf]
    %v21 = vld [vmem:[%s0 + $0x14] sm:$0xf]
    %v22 = vld [vmem:[%s0 + $0x18] sm:$0xf]
    %v23 = vld [vmem:[%s0 + $0x1c] sm:$0xf]
    %v24 = vld [vmem:[%s0 + $0x20] sm:$0xf]
    %v25 = vld [vmem:[%s0 + $0x24] sm:$0xf]
    %v26 = vld [vmem:[%s0 + $0x28] sm:$0xf]
    %v27 = vld [vmem:[%s0 + $0x2c] sm:$0xf]
    %v28 = vld [vmem:[%s0 + $0x30] sm:$0xf]
    %v29 = vld [vmem:[%s0 + $0x34] sm:$0xf]
    %v30 = vld [vmem:[%s0 + $0x38] sm:$0xf]
    %v31 = vld [vmem:[%s0 + $0x3c] sm:$0xf]
    %v32 = vld [vmem:[%s1] sm:$0xf]
    %v33 = vld [vmem:[%s1 + $0x4] sm:$0xf]
    %v34 = vld [vmem:[%s1 + $0x8] sm:$0xf]
    %v35 = vld [vmem:[%s1 + $0xc] sm:$0xf]
    %v36 = vld [vmem:[%s1 + $0x10] sm:$0xf]
    %v37 = vld [vmem:[%s1 + $0x14] sm:$0xf]
    %v38 = vld [vmem:[%s1 + $0x18] sm:$0xf]
    %v39 = vld [vmem:[%s1 + $0x1c] sm:$0xf]
    %v40 = vld [vmem:[%s2] sm:$0x1]
    %v42 = vperm.slane %v40, 0
    %v60 = vunpack.c.l.b16 %v16
    %v61 = vunpack.c.l.b16 %v17
    %v62 = vunpack.c.l.b16 %v18
    %v63 = vunpack.c.l.b16 %v19
    %v64 = vunpack.c.l.b16 %v20
    %v65 = vunpack.c.l.b16 %v21
    %v66 = vunpack.c.l.b16 %v22
    %v67 = vunpack.c.l.b16 %v23
    %v68 = vunpack.c.l.b16 %v24
    %v69 = vunpack.c.l.b16 %v25
    %v70 = vunpack.c.l.b16 %v26
    %v71 = vunpack.c.l.b16 %v27
    %v72 = vunpack.c.l.b16 %v28
    %v73 = vunpack.c.l.b16 %v29
    %v74 = vunpack.c.l.b16 %v30
    %v75 = vunpack.c.l.b16 %v31
    %v76 = vpack.c.b16 %v61, %v60
    %v77 = vpack.c.b16 %v63, %v62
    %v78 = vpack.c.b16 %v65, %v64
    %v79 = vpack.c.b16 %v67, %v66
    %v80 = vpack.c.b16 %v69, %v68
    %v81 = vpack.c.b16 %v71, %v70
    %v82 = vpack.c.b16 %v73, %v72
    %v83 = vpack.c.b16 %v75, %v74
    %v92 = vunpack.c.l.b16 %v32
    %v93 = vunpack.c.l.b16 %v33
    %v94 = vunpack.c.l.b16 %v34
    %v95 = vunpack.c.l.b16 %v35
    %v96 = vunpack.c.l.b16 %v36
    %v97 = vunpack.c.l.b16 %v37
    %v98 = vunpack.c.l.b16 %v38
    %v99 = vunpack.c.l.b16 %v39
    %v100 = vpack.c.b16 %v93, %v92
    %v101 = vpack.c.b16 %v95, %v94
    %v102 = vpack.c.b16 %v97, %v96
    %v103 = vpack.c.b16 %v99, %v98
    %vm108 = vcmask 523264
    %v110 = vsel %vm108, %v76, 0
    %v113 = vsel %vm108, %v77, 0
    %v116 = vsel %vm108, %v78, 0
    %v119 = vsel %vm108, %v79, 0
    %v122 = vsel %vm108, %v80, 0
    %v125 = vsel %vm108, %v81, 0
    %v128 = vsel %vm108, %v82, 0
    %v131 = vsel %vm108, %v83, 0
    %133 = vmatpush.bf16.msra.mxu0 0
    %134 = vmatpush.bf16.msra.mxu0 0
    %135 = vmatpush.bf16.msra.mxu0 0
    %136 = vmatpush.bf16.msra.mxu0 0
    %137 = vmatpush.bf16.msra.mxu0 %v103
    %138 = vmatpush.bf16.msra.mxu0 %v102
    %139 = vmatpush.bf16.msra.mxu0 %v101
    %140 = vmatpush.bf16.msra.mxu0 %v100
    %141 = vmatmul.bf16.gmra.mxu0 %v110
    %v142 = vpop.f32.mrf.mxu0
    %v143 = vadd.f32 %v42, %v142
    %v144 = vpop.f32.mrf.mxu0
    %v145 = vadd.f32 %v42, %v144
    %146 = vmatmul.bf16.gmra.mxu0 %v113
    %v147 = vpop.f32.mrf.mxu0
    %v148 = vadd.f32 %v42, %v147
    %v149 = vpop.f32.mrf.mxu0
    %v150 = vadd.f32 %v42, %v149
    %151 = vmatmul.bf16.gmra.mxu0 %v116
    %v152 = vpop.f32.mrf.mxu0
    %v153 = vadd.f32 %v42, %v152
    %v154 = vpop.f32.mrf.mxu0
    %v155 = vadd.f32 %v42, %v154
    %156 = vmatmul.bf16.gmra.mxu0 %v119
    %v157 = vpop.f32.mrf.mxu0
    %v158 = vadd.f32 %v42, %v157
    %v159 = vpop.f32.mrf.mxu0
    %v160 = vadd.f32 %v42, %v159
    %161 = vmatmul.bf16.gmra.mxu0 %v122
    %v162 = vpop.f32.mrf.mxu0
    %v163 = vadd.f32 %v42, %v162
    %v164 = vpop.f32.mrf.mxu0
    %v165 = vadd.f32 %v42, %v164
    %166 = vmatmul.bf16.gmra.mxu0 %v125
    %v167 = vpop.f32.mrf.mxu0
    %v168 = vadd.f32 %v42, %v167
    %v169 = vpop.f32.mrf.mxu0
    %v170 = vadd.f32 %v42, %v169
    %171 = vmatmul.bf16.gmra.mxu0 %v128
    %v172 = vpop.f32.mrf.mxu0
    %v173 = vadd.f32 %v42, %v172
    %v174 = vpop.f32.mrf.mxu0
    %v175 = vadd.f32 %v42, %v174
    %176 = vmatmul.bf16.gmra.mxu0 %v131
    %v177 = vpop.f32.mrf.mxu0
    %v178 = vadd.f32 %v42, %v177
    %v179 = vpop.f32.mrf.mxu0
    %v180 = vadd.f32 %v42, %v179
    %181 = vdwg.mxu0
    %v182 = vpack.c.bf16 %v143, %v143
    %v183 = vpack.c.bf16 %v145, %v145
    %v184 = vpack.c.bf16 %v148, %v148
    %v185 = vpack.c.bf16 %v150, %v150
    %v186 = vpack.c.bf16 %v153, %v153
    %v187 = vpack.c.bf16 %v155, %v155
    %v188 = vpack.c.bf16 %v158, %v158
    %v189 = vpack.c.bf16 %v160, %v160
    %v190 = vpack.c.bf16 %v163, %v163
    %v191 = vpack.c.bf16 %v165, %v165
    %v192 = vpack.c.bf16 %v168, %v168
    %v193 = vpack.c.bf16 %v170, %v170
    %v194 = vpack.c.bf16 %v173, %v173
    %v195 = vpack.c.bf16 %v175, %v175
    %v196 = vpack.c.bf16 %v178, %v178
    %v197 = vpack.c.bf16 %v180, %v180
    %198 = vst [vmem:[#allocation2] sm:$0xf] %v182
    %199 = vst [vmem:[#allocation2 + $0x4] sm:$0xf] %v183
    %200 = vst [vmem:[#allocation2 + $0x8] sm:$0xf] %v184
    %201 = vst [vmem:[#allocation2 + $0xc] sm:$0xf] %v185
    %202 = vst [vmem:[#allocation2 + $0x10] sm:$0xf] %v186
    %203 = vst [vmem:[#allocation2 + $0x14] sm:$0xf] %v187
    %204 = vst [vmem:[#allocation2 + $0x18] sm:$0xf] %v188
    %205 = vst [vmem:[#allocation2 + $0x1c] sm:$0xf] %v189
    %206 = vst [vmem:[#allocation2 + $0x20] sm:$0xf] %v190
    %207 = vst [vmem:[#allocation2 + $0x24] sm:$0xf] %v191
    %208 = vst [vmem:[#allocation2 + $0x28] sm:$0xf] %v192
    %209 = vst [vmem:[#allocation2 + $0x2c] sm:$0xf] %v193
    %210 = vst [vmem:[#allocation2 + $0x30] sm:$0xf] %v194
    %211 = vst [vmem:[#allocation2 + $0x34] sm:$0xf] %v195
    %212 = vst [vmem:[#allocation2 + $0x38] sm:$0xf] %v196
    %213 = vst [vmem:[#allocation2 + $0x3c] sm:$0xf] %v197
    // Predicated region
    $region14: #{gsnet_forward.8} parent=1 // pred_check
      _
    $region15: #{gsnet_forward.8} parent=1 // pred_check_branch
      %215 = sbr.rel (0) target = $region17
    $region16: #{gsnet_forward.8} parent=1 // pred_region
      %217 = vsyncadd [#allocation3], 0
      %s218 = sshll.u32 [#allocation2], 4
      %s219 = int_to_ptr.vmem [resolvable:$true] %s218
      %s220 = sshll.u32 %s3, 4
      %s221 = int_to_ptr.hbm [resolvable:$true] %s220
      %226 = dma.vmem_to_hbm [thread:$0]  %s219, 1024, %s221, [#allocation3], 64, 64, 4
    $region17: #{gsnet_forward.8} parent=1 // pred_fallthru
      _
    // Predicated region
    $region18: #{gsnet_forward.8} parent=1 // pred_check
      _
    $region19: #{gsnet_forward.8} parent=1 // pred_check_branch
      %228 = sbr.rel (0) target = $region21
    $region20: #{gsnet_forward.8} parent=1 // pred_region
      %230 = dma.done [#allocation3], 1024
    $region21: #{gsnet_forward.8} parent=1 // pred_fallthru
      _
    %231 = vsyncpa [#allocation3], 1

</llo_original>
